<compile_context>
chip_gen: v5e
topology: v5e:2x2
jax: 0.10.0
libtpu: 0.0.40
codegen_flags: <defaults>
</compile_context>

<pallas_src>
import functools

import jax
import jax.numpy as jnp
from jax import lax
from jax.experimental import pallas as pl
from jax.experimental.pallas import tpu as pltpu


def _self_attention_kernel(x_ref, wq_ref, bq_ref, wkv_ref, bkv_ref,
                           wo_ref, bo_ref, out_ref, kT_sc, vT_sc, *, ch, tq):
    """One (batch, query-tile) step, channel-major (lane-dense) layout.

    x_ref   : (1, C, N)   f32  input, channels on sublanes, tokens on lanes
    wq_ref  : (Ch, C)     bf16 query projection (1/sqrt(channels) pre-folded)
    bq_ref  : (Ch, 1)     f32
    wkv_ref : (2Ch, C)    bf16 fused key+value projection
    bkv_ref : (2Ch, 1)    f32
    wo_ref  : (Cout, Ch)  f32  output projection (tiny; kept f32 for accuracy)
    bo_ref  : (Cout, 1)   f32
    out_ref : (1, Cout, TQ)
    kT_sc   : (Ch, N)     bf16 per-batch cached k^T
    vT_sc   : (Ch, N)     bf16 per-batch cached v^T
    """
    qt = pl.program_id(1)
    q_start = pl.multiple_of(qt * tq, tq)

    # ---- once per batch: fused k/v projection into persistent bf16 scratch ----
    @pl.when(qt == 0)
    def _():
        x_bf = x_ref[0].astype(jnp.bfloat16)                                   # (C, N)
        kvT = jnp.dot(wkv_ref[...], x_bf,
                      preferred_element_type=jnp.float32) + bkv_ref[...]        # (2Ch, N) f32
        kT_sc[...] = kvT[:ch].astype(jnp.bfloat16)
        vT_sc[...] = kvT[ch:].astype(jnp.bfloat16)

    # ---- per query tile ----
    x_q = x_ref[0, :, pl.ds(q_start, tq)]                                       # (C, TQ) f32 (residual)
    qT = jnp.dot(wq_ref[...], x_q.astype(jnp.bfloat16),
                 preferred_element_type=jnp.float32) + bq_ref[...]              # (Ch, TQ) f32
    q_bf = qT.astype(jnp.bfloat16)

    # simT[j, i] = sum_c k[c, j] * q_scaled[c, i]  (keys on sublanes, queries on
    # lanes); contraction over dim 0 of both operands -> no materialized k^T.
    simT = lax.dot_general(kT_sc[...], q_bf, (((0,), (0,)), ((), ())),
                           preferred_element_type=jnp.float32)                  # (N, TQ)

    # Softmax over keys (axis 0); normalization deferred past p@v and wo.
    m = jnp.max(simT, axis=0, keepdims=True)                                    # (1, TQ)
    p = jnp.exp(simT - m)                                                       # (N, TQ)
    inv = pl.reciprocal(jnp.sum(p, axis=0, keepdims=True), approx=True)         # (1, TQ) EUP

    ctxT = jnp.dot(vT_sc[...], p.astype(jnp.bfloat16),
                   preferred_element_type=jnp.float32)                          # (Ch, TQ)
    outT = jnp.dot(wo_ref[...], ctxT, preferred_element_type=jnp.float32)       # (Cout, TQ)
    outT = outT * inv + bo_ref[...] + x_q                                       # residual: Cout == C

    out_ref[0] = outT.astype(out_ref.dtype)                                     # lane-dense store


def _pick_vmem_limit_bytes():
    """Generation-aware scoped-VMEM limit (v7x: 64 MiB/TC, v5e/v6e: 128 MiB)."""
    try:
        cap = int(pltpu.get_tpu_info().vmem_capacity_bytes)
        return max(32 * 1024 * 1024, min(cap // 2, 96 * 1024 * 1024))
    except Exception:
        return 32 * 1024 * 1024


def self_attention_block(x_nchw, raw_params, channels):
    """x_nchw: (B, C, H, W) float32.  Returns (B, C, H, W)."""
    B, C, H, W = x_nchw.shape
    N = H * W
    wq, bq, wk, bk, wv, bv, wo, bo = raw_params     # PyTorch-style: W (out, in), b (out,)
    Ch = channels
    Cout = wo.shape[0]
    assert Cout == C, "out_channels defaults to query_in_channels"
    assert Ch % 8 == 0, "channels must be a multiple of the sublane tile"

    # Fold the matmul_norm scale into the query projection (exact, zero kernel
    # cost), fuse key/value projections, reshape biases to column vectors.
    # Big-matmul weights are cast to bf16 (MXU rate); biases / wo stay f32.
    scale = float(channels) ** -0.5
    wq_s = (wq.astype(jnp.float32) * scale).astype(jnp.bfloat16)            # (Ch, C) bf16
    bq_s = (bq.astype(jnp.float32) * scale).reshape(Ch, 1)                  # (Ch, 1) f32
    wkv = jnp.concatenate([wk, wv], axis=0).astype(jnp.bfloat16)            # (2Ch, C) bf16
    bkv = jnp.concatenate([bk, bv], axis=0).reshape(2 * Ch, 1).astype(jnp.float32)
    wo2 = wo.astype(jnp.float32)                                            # (Cout, Ch)
    bo2 = bo.reshape(Cout, 1).astype(jnp.float32)                           # (Cout, 1)

    # Channel-major layout: NCHW -> (B, C, N); tokens map to TPU lanes.
    x_bcn = x_nchw.reshape(B, C, N)

    # Query-tile width: 256 fills the 256-wide MXU (v6e/v7x); 128 fallback.
    if N % 256 == 0:
        TQ = 256
    elif N % 128 == 0:
        TQ = 128
    else:
        TQ = N   # TODO(synk): pad N instead for large non-aligned N (VMEM footgun)
    grid = (B, N // TQ)

    kernel = functools.partial(_self_attention_kernel, ch=Ch, tq=TQ)

    out_bcn = pl.pallas_call(
        kernel,
        out_shape=jax.ShapeDtypeStruct((B, Cout, N), x_nchw.dtype),
        grid=grid,
        in_specs=[
            pl.BlockSpec((1, C, N), lambda b, qt: (b, 0, 0)),     # x (one DMA per batch)
            pl.BlockSpec((Ch, C), lambda b, qt: (0, 0)),          # wq (scaled, bf16)
            pl.BlockSpec((Ch, 1), lambda b, qt: (0, 0)),          # bq (scaled)
            pl.BlockSpec((2 * Ch, C), lambda b, qt: (0, 0)),      # fused wk|wv (bf16)
            pl.BlockSpec((2 * Ch, 1), lambda b, qt: (0, 0)),      # fused bk|bv
            pl.BlockSpec((Cout, Ch), lambda b, qt: (0, 0)),       # wo
            pl.BlockSpec((Cout, 1), lambda b, qt: (0, 0)),        # bo
        ],
        out_specs=pl.BlockSpec((1, Cout, TQ), lambda b, qt: (b, 0, qt)),
        scratch_shapes=[
            pltpu.VMEM((Ch, N), jnp.bfloat16),                    # cached k^T (per batch)
            pltpu.VMEM((Ch, N), jnp.bfloat16),                    # cached v^T (per batch)
        ],
        compiler_params=pltpu.CompilerParams(
            # batch axis parallel (megacore); query-tile axis carries the kv cache.
            dimension_semantics=("parallel", "arbitrary"),
            vmem_limit_bytes=_pick_vmem_limit_bytes()),
    )(x_bcn, wq_s, bq_s, wkv, bkv, wo2, bo2)

    return out_bcn.reshape(B, Cout, H, W)


def _reference(x_nchw, raw_params, channels):
    """Pure-JAX reference mirroring the PyTorch forward."""
    B, C, H, W = x_nchw.shape
    N = H * W
    wq, bq, wk, bk, wv, bv, wo, bo = raw_params
    x = x_nchw.reshape(B, C, N)                                   # (B, C, N)
    q = jnp.einsum("oc,bcn->bno", wq, x) + bq                     # (B, N, Ch)
    k = jnp.einsum("oc,bcn->bno", wk, x) + bk
    v = jnp.einsum("oc,bcn->bno", wv, x) + bv
    sim = jnp.einsum("bqc,bkc->bqk", q, k) * (float(channels) ** -0.5)
    p = jax.nn.softmax(sim, axis=-1)
    ctx = jnp.einsum("bqk,bkc->bqc", p, v)                        # (B, N, Ch)
    out = jnp.einsum("oc,bnc->bon", wo, ctx) + bo[None, :, None]  # (B, Cout, N)
    out = out + x                                                 # residual
    return out.reshape(B, C, H, W)


if __name__ == "__main__":
    B, C, H, W = 2, 4, 16, 16      # query_in_channels = out_channels = 4
    channels = 32                   # key/query/value transform channels

    key = jax.random.PRNGKey(0)
    keys = jax.random.split(key, 9)
    x = jax.random.normal(keys[0], (B, C, H, W), dtype=jnp.float32)

    # Conv1d(in, out, 1) weights stored as (out, in); biases as (out,).
    def _w(k, cout, cin):
        return 0.1 * jax.random.normal(k, (cout, cin), dtype=jnp.float32)

    def _b(k, cout):
        return 0.05 * jax.random.normal(k, (cout,), dtype=jnp.float32)

    raw_params = (
        _w(keys[1], channels, C), _b(keys[2], channels),   # query_project
        _w(keys[3], channels, C), _b(keys[4], channels),   # key_project
        _w(keys[5], channels, C), _b(keys[6], channels),   # value_project
        _w(keys[7], C, channels), _b(keys[8], C),          # out_project (non-zero init)
    )

    out = jax.block_until_ready(self_attention_block(x, raw_params, channels))
    ref = jax.block_until_ready(_reference(x, raw_params, channels))

    assert out.shape == x.shape
    max_err = jnp.max(jnp.abs(out - ref))
    # Tolerance loosened (vs pure-f32) for bf16 MXU operands + approx reciprocal.
    assert jnp.allclose(out, ref, atol=2e-2, rtol=2e-2), f"mismatch vs reference (max |err| {max_err})"
    print("KERNEL_OK")
</pallas_src>

<mosaic_0001>
module attributes {stable_mosaic.version = 11 : i64} {
  func.func @_self_attention_kernel(%arg0: i32, %arg1: i32, %arg2: memref<1x4x256xf32, #tpu.memory_space<vmem>>, %arg3: memref<32x4xbf16, #tpu.memory_space<vmem>>, %arg4: memref<32x1xf32, #tpu.memory_space<vmem>>, %arg5: memref<64x4xbf16, #tpu.memory_space<vmem>>, %arg6: memref<64x1xf32, #tpu.memory_space<vmem>>, %arg7: memref<4x32xf32, #tpu.memory_space<vmem>>, %arg8: memref<4x1xf32, #tpu.memory_space<vmem>>, %arg9: memref<1x4x256xf32, #tpu.memory_space<vmem>>, %arg10: memref<32x256xbf16, #tpu.memory_space<vmem>>, %arg11: memref<32x256xbf16, #tpu.memory_space<vmem>>) attributes {dimension_semantics = [#tpu.dimension_semantics<parallel>, #tpu.dimension_semantics<arbitrary>], iteration_bounds = array<i64: 2, 1>, scalar_prefetch = 0 : i64, scratch_operands = 2 : i64, tpu.core_type = #tpu.core_type<tc>, window_params = [{transform_indices = @transform_0, window_bounds = array<i64: 1, 4, 256>}, {pipeline_mode = #tpu.pipeline_mode<synchronous>, transform_indices = @transform_1, window_bounds = array<i64: 32, 4>}, {pipeline_mode = #tpu.pipeline_mode<synchronous>, transform_indices = @transform_2, window_bounds = array<i64: 32, 1>}, {pipeline_mode = #tpu.pipeline_mode<synchronous>, transform_indices = @transform_3, window_bounds = array<i64: 64, 4>}, {pipeline_mode = #tpu.pipeline_mode<synchronous>, transform_indices = @transform_4, window_bounds = array<i64: 64, 1>}, {pipeline_mode = #tpu.pipeline_mode<synchronous>, transform_indices = @transform_5, window_bounds = array<i64: 4, 32>}, {pipeline_mode = #tpu.pipeline_mode<synchronous>, transform_indices = @transform_6, window_bounds = array<i64: 4, 1>}, {transform_indices = @transform_7, window_bounds = array<i64: 1, 4, 256>}]} {
    %c256_i32 = arith.constant 256 : i32
    %0 = arith.muli %arg1, %c256_i32 : i32
    %1 = tpu.assume_multiple %0, 256 : i32
    %c0_i32 = arith.constant 0 : i32
    %2 = arith.cmpi eq, %arg1, %c0_i32 : i32
    %3 = arith.extui %2 : i1 to i32
    %c0_i32_0 = arith.constant 0 : i32
    %4 = arith.cmpi ne, %3, %c0_i32_0 : i32
    scf.if %4 {
      %c0_22 = arith.constant 0 : index
      %c0_23 = arith.constant 0 : index
      %c0_24 = arith.constant 0 : index
      %39 = vector.load %arg2[%c0_22, %c0_23, %c0_24] : memref<1x4x256xf32, #tpu.memory_space<vmem>>, vector<1x4x256xf32>
      %40 = vector.shape_cast %39 : vector<1x4x256xf32> to vector<4x256xf32>
      %41 = arith.truncf %40 : vector<4x256xf32> to vector<4x256xbf16>
      %c0_25 = arith.constant 0 : index
      %c0_26 = arith.constant 0 : index
      %42 = vector.load %arg5[%c0_25, %c0_26] : memref<64x4xbf16, #tpu.memory_space<vmem>>, vector<64x4xbf16>
      %cst_27 = arith.constant dense<0.000000e+00> : vector<64x256xf32>
      %43 = tpu.matmul %42, %41, %cst_27 {dimension_numbers = #tpu.dot_dimension_numbers<[1], [0], [0], [1], [0, 0, 1, 1], [], []>} : vector<64x4xbf16>, vector<4x256xbf16>, vector<64x256xf32> -> vector<64x256xf32>
      %c0_28 = arith.constant 0 : index
      %c0_29 = arith.constant 0 : index
      %44 = vector.load %arg6[%c0_28, %c0_29] : memref<64x1xf32, #tpu.memory_space<vmem>>, vector<64x1xf32>
      %45 = vector.broadcast %44 : vector<64x1xf32> to vector<64x256xf32>
      %46 = arith.addf %43, %45 : vector<64x256xf32>
      %47 = vector.extract_strided_slice %46 {offsets = [0, 0], sizes = [32, 256], strides = [1, 1]} : vector<64x256xf32> to vector<32x256xf32>
      %48 = arith.truncf %47 : vector<32x256xf32> to vector<32x256xbf16>
      %c0_30 = arith.constant 0 : index
      %c0_31 = arith.constant 0 : index
      %49 = vector.load %arg10[%c0_30, %c0_31] : memref<32x256xbf16, #tpu.memory_space<vmem>>, vector<32x256xbf16>
      tpu.vector_store %arg10[%c0_30, %c0_31], %48 {strides = array<i32>} : memref<32x256xbf16, #tpu.memory_space<vmem>>, vector<32x256xbf16>,
      %50 = vector.extract_strided_slice %46 {offsets = [32, 0], sizes = [32, 256], strides = [1, 1]} : vector<64x256xf32> to vector<32x256xf32>
      %51 = arith.truncf %50 : vector<32x256xf32> to vector<32x256xbf16>
      %c0_32 = arith.constant 0 : index
      %c0_33 = arith.constant 0 : index
      %52 = vector.load %arg11[%c0_32, %c0_33] : memref<32x256xbf16, #tpu.memory_space<vmem>>, vector<32x256xbf16>
      tpu.vector_store %arg11[%c0_32, %c0_33], %51 {strides = array<i32>} : memref<32x256xbf16, #tpu.memory_space<vmem>>, vector<32x256xbf16>,
    } else {
    }
    %c0 = arith.constant 0 : index
    %c0_1 = arith.constant 0 : index
    %5 = arith.index_cast %1 : i32 to index
    %6 = vector.load %arg2[%c0, %c0_1, %5] : memref<1x4x256xf32, #tpu.memory_space<vmem>>, vector<1x4x256xf32>
    %7 = vector.shape_cast %6 : vector<1x4x256xf32> to vector<4x256xf32>
    %c0_2 = arith.constant 0 : index
    %c0_3 = arith.constant 0 : index
    %8 = vector.load %arg3[%c0_2, %c0_3] : memref<32x4xbf16, #tpu.memory_space<vmem>>, vector<32x4xbf16>
    %9 = arith.truncf %7 : vector<4x256xf32> to vector<4x256xbf16>
    %cst = arith.constant dense<0.000000e+00> : vector<32x256xf32>
    %10 = tpu.matmul %8, %9, %cst {dimension_numbers = #tpu.dot_dimension_numbers<[1], [0], [0], [1], [0, 0, 1, 1], [], []>} : vector<32x4xbf16>, vector<4x256xbf16>, vector<32x256xf32> -> vector<32x256xf32>
    %c0_4 = arith.constant 0 : index
    %c0_5 = arith.constant 0 : index
    %11 = vector.load %arg4[%c0_4, %c0_5] : memref<32x1xf32, #tpu.memory_space<vmem>>, vector<32x1xf32>
    %12 = vector.broadcast %11 : vector<32x1xf32> to vector<32x256xf32>
    %13 = arith.addf %10, %12 : vector<32x256xf32>
    %14 = arith.truncf %13 : vector<32x256xf32> to vector<32x256xbf16>
    %c0_6 = arith.constant 0 : index
    %c0_7 = arith.constant 0 : index
    %15 = vector.load %arg10[%c0_6, %c0_7] : memref<32x256xbf16, #tpu.memory_space<vmem>>, vector<32x256xbf16>
    %cst_8 = arith.constant dense<0.000000e+00> : vector<256x256xf32>
    %16 = tpu.matmul %15, %14, %cst_8 {dimension_numbers = #tpu.dot_dimension_numbers<[0], [0], [1], [1], [0, 1, 1, 1], [], []>} : vector<32x256xbf16>, vector<32x256xbf16>, vector<256x256xf32> -> vector<256x256xf32>
    %cst_9 = arith.constant dense<0xFF800000> : vector<256xf32>
    %17 = vector.multi_reduction <maximumf>, %16, %cst_9 [0] : vector<256x256xf32> to vector<256xf32>
    %18 = vector.shape_cast %17 : vector<256xf32> to vector<1x256xf32>
    %19 = vector.broadcast %18 : vector<1x256xf32> to vector<256x256xf32>
    %20 = arith.subf %16, %19 : vector<256x256xf32>
    %21 = math.exp %20 : vector<256x256xf32>
    %cst_10 = arith.constant dense<0.000000e+00> : vector<256xf32>
    %22 = vector.multi_reduction <add>, %21, %cst_10 [0] : vector<256x256xf32> to vector<256xf32>
    %23 = vector.shape_cast %22 : vector<256xf32> to vector<1x256xf32>
    %24 = tpu.reciprocal %23 {approx = true} : vector<1x256xf32> -> vector<1x256xf32>
    %c0_11 = arith.constant 0 : index
    %c0_12 = arith.constant 0 : index
    %25 = vector.load %arg11[%c0_11, %c0_12] : memref<32x256xbf16, #tpu.memory_space<vmem>>, vector<32x256xbf16>
    %26 = arith.truncf %21 : vector<256x256xf32> to vector<256x256xbf16>
    %cst_13 = arith.constant dense<0.000000e+00> : vector<32x256xf32>
    %27 = tpu.matmul %25, %26, %cst_13 {dimension_numbers = #tpu.dot_dimension_numbers<[1], [0], [0], [1], [0, 0, 1, 1], [], []>} : vector<32x256xbf16>, vector<256x256xbf16>, vector<32x256xf32> -> vector<32x256xf32>
    %c0_14 = arith.constant 0 : index
    %c0_15 = arith.constant 0 : index
    %28 = vector.load %arg7[%c0_14, %c0_15] : memref<4x32xf32, #tpu.memory_space<vmem>>, vector<4x32xf32>
    %cst_16 = arith.constant dense<0.000000e+00> : vector<4x256xf32>
    %29 = tpu.matmul %28, %27, %cst_16 {dimension_numbers = #tpu.dot_dimension_numbers<[1], [0], [0], [1], [0, 0, 1, 1], [], []>} : vector<4x32xf32>, vector<32x256xf32>, vector<4x256xf32> -> vector<4x256xf32>
    %30 = vector.broadcast %24 : vector<1x256xf32> to vector<4x256xf32>
    %31 = arith.mulf %29, %30 : vector<4x256xf32>
    %c0_17 = arith.constant 0 : index
    %c0_18 = arith.constant 0 : index
    %32 = vector.load %arg8[%c0_17, %c0_18] : memref<4x1xf32, #tpu.memory_space<vmem>>, vector<4x1xf32>
    %33 = vector.broadcast %32 : vector<4x1xf32> to vector<4x256xf32>
    %34 = arith.addf %31, %33 : vector<4x256xf32>
    %35 = arith.addf %34, %7 : vector<4x256xf32>
    %c0_19 = arith.constant 0 : index
    %c0_20 = arith.constant 0 : index
    %c0_21 = arith.constant 0 : index
    %36 = vector.load %arg9[%c0_19, %c0_20, %c0_21] : memref<1x4x256xf32, #tpu.memory_space<vmem>>, vector<1x4x256xf32>
    %37 = vector.shape_cast %36 : vector<1x4x256xf32> to vector<4x256xf32>
    %38 = vector.shape_cast %35 : vector<4x256xf32> to vector<1x4x256xf32>
    tpu.vector_store %arg9[%c0_19, %c0_20, %c0_21], %38 {strides = array<i32>} : memref<1x4x256xf32, #tpu.memory_space<vmem>>, vector<1x4x256xf32>,
    return
  }
  func.func @transform_0(%arg0: i32, %arg1: i32) -> (i32, i32, i32) {
    %c0_i32 = arith.constant 0 : i32
    %c0_i32_0 = arith.constant 0 : i32
    %c0_i32_1 = arith.constant 0 : i32
    return %arg0, %c0_i32, %c0_i32_0 : i32, i32, i32
  }
  func.func @transform_1(%arg0: i32, %arg1: i32) -> (i32, i32) {
    %c0_i32 = arith.constant 0 : i32
    %c0_i32_0 = arith.constant 0 : i32
    %c0_i32_1 = arith.constant 0 : i32
    return %c0_i32, %c0_i32_0 : i32, i32
  }
  func.func @transform_2(%arg0: i32, %arg1: i32) -> (i32, i32) {
    %c0_i32 = arith.constant 0 : i32
    %c0_i32_0 = arith.constant 0 : i32
    %c0_i32_1 = arith.constant 0 : i32
    return %c0_i32, %c0_i32_0 : i32, i32
  }
  func.func @transform_3(%arg0: i32, %arg1: i32) -> (i32, i32) {
    %c0_i32 = arith.constant 0 : i32
    %c0_i32_0 = arith.constant 0 : i32
    %c0_i32_1 = arith.constant 0 : i32
    return %c0_i32, %c0_i32_0 : i32, i32
  }
  func.func @transform_4(%arg0: i32, %arg1: i32) -> (i32, i32) {
    %c0_i32 = arith.constant 0 : i32
    %c0_i32_0 = arith.constant 0 : i32
    %c0_i32_1 = arith.constant 0 : i32
    return %c0_i32, %c0_i32_0 : i32, i32
  }
  func.func @transform_5(%arg0: i32, %arg1: i32) -> (i32, i32) {
    %c0_i32 = arith.constant 0 : i32
    %c0_i32_0 = arith.constant 0 : i32
    %c0_i32_1 = arith.constant 0 : i32
    return %c0_i32, %c0_i32_0 : i32, i32
  }
  func.func @transform_6(%arg0: i32, %arg1: i32) -> (i32, i32) {
    %c0_i32 = arith.constant 0 : i32
    %c0_i32_0 = arith.constant 0 : i32
    %c0_i32_1 = arith.constant 0 : i32
    return %c0_i32, %c0_i32_0 : i32, i32
  }
  func.func @transform_7(%arg0: i32, %arg1: i32) -> (i32, i32, i32) {
    %c0_i32 = arith.constant 0 : i32
    %c0_i32_0 = arith.constant 0 : i32
    return %arg0, %c0_i32, %arg1 : i32, i32, i32
  }
}

</mosaic_0001>

<llo_original>
// kernel: tpu_custom_call.1
$region0: #{tpu_custom_call.1}
  #allocation0 [shape = 'u32[]', space=smem, size = 0x4, offset = 0x4, fixed_abs, tag = 'smem constant byte address 0x4 - core index']
  #allocation1 [shape = 'u32[72,128]{1,0:T(1,128)}', space=vmem, size = 0x9000, scoped, tag = 'internal scratch']
  #allocation2 [shape = 'bf16[32,256]{1,0:T(8,128)(2,1)}', space=vmem, size = 0x4000, scoped, tag = 'scratch operand']
  #allocation3 [shape = 'bf16[32,256]{1,0:T(8,128)(2,1)}', space=vmem, size = 0x4000, scoped, tag = 'scratch operand']
  %s0 = inlined_call_operand.vmem [shape: f32[2,4,256], index: 0, kind: input, shape index: {}]
  %s1 = inlined_call_operand.vmem [shape: bf16[32,4], index: 1, kind: input, shape index: {}]
  %s2 = inlined_call_operand.vmem [shape: f32[32,1], index: 2, kind: input, shape index: {}]
  %s3 = inlined_call_operand.vmem [shape: bf16[64,4], index: 3, kind: input, shape index: {}]
  %s4 = inlined_call_operand.vmem [shape: f32[64,1], index: 4, kind: input, shape index: {}]
  %s5 = inlined_call_operand.vmem [shape: f32[4,32], index: 5, kind: input, shape index: {}]
  %s6 = inlined_call_operand.vmem [shape: f32[4,1], index: 6, kind: input, shape index: {}]
  %s7 = inlined_call_operand.hbm [shape: f32[2,4,256], index: 7, kind: output, shape index: {}]
  %s8 = sld [smem:[#allocation0]]
  $region65: #{tpu_custom_call.1} parent=0
    _
  %s10 = ssub.s32 1, %s8
  %s11 = scalar_select 0, %s10, %s8
  $region1: #{tpu_custom_call.1} parent=0
    #allocation4 [shape = 'u8[8192]{0}', space=vmem, size = 0x2000, scoped, tag = 'output window, operand 0']
    #allocation5 [shape = 's32[2]{0}', space=sflag, size = 0x8, scoped, tag = 'scoped memory for tpu_custom_call.1']
    %12 = vsyncpa [#allocation5], 0
    %s13 = scalar_lea.sflag [#allocation5], 1
    %14 = vsyncpa %s13, 0
    loop: start=0, step=1, limit=4
    $region2: #{tpu_custom_call.1} parent=1 // loop_pre_header
      _
    $region3: #{tpu_custom_call.1} parent=1 // loop_header
      %s16 = sphi 0, %s20
      %p17 = scmp.ge.s32.totalorder %s16, 4
      %s23 = sphi 0, %s35
      %s24 = sphi 0, %s31
      %s25 = sphi 0, %s23
      %s26 = sphi 0, %s24
      %s27 = sphi 0, %s25
      %s28 = sphi 0, %s26
      %s38 = sphi 0, %s40
      %s41 = sphi 0, %s38
      %s42 = sphi 0, %s41
      %s58 = sphi 0, %s42
      %s62 = sphi 0, %s62
      %s64 = sphi 0, %s62
      %s65 = sphi 0, %s64
      %s79 = sphi 0, %s65
      %s83 = sphi 0, %s83
      %s85 = sphi 0, %s83
      %s86 = sphi 0, %s85
      %s100 = sphi 0, %s86
      %s104 = sphi 0, %s104
      %s106 = sphi 0, %s104
      %s107 = sphi 0, %s106
      %s121 = sphi 0, %s107
      %s125 = sphi 0, %s125
      %s127 = sphi 0, %s125
      %s128 = sphi 0, %s127
      %s142 = sphi 0, %s128
      %s146 = sphi 0, %s146
      %s148 = sphi 0, %s146
      %s149 = sphi 0, %s148
      %s163 = sphi 0, %s149
      %s167 = sphi 0, %s167
      %s169 = sphi 0, %s167
      %s170 = sphi 0, %s169
      %s184 = sphi 0, %s170
      %s192 = sphi 0, %s194
      %s195 = sphi 0, %s192
      %s196 = sphi 0, %s195
      %s212 = sphi 0, %s196
    $region4: #{tpu_custom_call.1} parent=1 // loop_header_branch
      %19 = sbr.rel (%p17) target = $region8
    $region5: #{tpu_custom_call.1} parent=1 // loop_body
      %s21 = ssub.s32 %s16, 1
      %s22 = ssub.s32 %s16, 2
      %s29 = sadd.s32 1, %s24
      %p30 = scmp.ge.s32.totalorder %s29, 1
      %s31 = scalar_select %p30, 0, %s29
      %s32 = sadd.s32 1, %s23
      %s33 = scalar_select %p30, %s32, %s23
      %p34 = scmp.ge.s32.totalorder %s33, 2
      %s35 = scalar_select %p34, 0, %s33
      %s36 = ssub.s32 %s23, %s35
      %p37 = scmp.eq.s32.totalorder %s36, 0
      %s39 = sadd.s32 %s38, 1
      %s40 = scalar_select %p37, %s38, %s39
      %p43 = pneg %p37
      %p44 = scmp.eq.s32.totalorder %s16, 1
      %p45 = por %p43, %p44
      %p46 = scmp.ne.s32.totalorder %s38, %s41
      %p47 = scmp.eq.s32.totalorder %s16, 0
      %p48 = por %p46, %p47
      %p49 = scmp.ne.s32.totalorder %s38, %s41
      %p50 = scmp.eq.s32.totalorder %s21, 1
      %p51 = por %p49, %p50
      %p52 = scmp.ne.s32.totalorder %s41, %s42
      %p53 = scmp.eq.s32.totalorder %s21, 0
      %p54 = por %p52, %p53
      %p55 = scmp.ne.s32.totalorder %s41, %s42
      %p56 = scmp.eq.s32.totalorder %s22, 1
      %p57 = por %p55, %p56
      %p59 = scmp.ne.s32.totalorder %s42, %s58
      %p60 = scmp.eq.s32.totalorder %s22, 0
      %p61 = por %p59, %p60
      %s63 = sadd.s32 %s62, 1
      %p66 = scmp.eq.s32.totalorder %s16, 1
      %p67 = scmp.ne.s32.totalorder %s62, %s64
      %p68 = scmp.eq.s32.totalorder %s16, 0
      %p69 = por %p67, %p68
      %p70 = scmp.ne.s32.totalorder %s62, %s64
      %p71 = scmp.eq.s32.totalorder %s21, 1
      %p72 = por %p70, %p71
      %p73 = scmp.ne.s32.totalorder %s64, %s65
      %p74 = scmp.eq.s32.totalorder %s21, 0
      %p75 = por %p73, %p74
      %p76 = scmp.ne.s32.totalorder %s64, %s65
      %p77 = scmp.eq.s32.totalorder %s22, 1
      %p78 = por %p76, %p77
      %p80 = scmp.ne.s32.totalorder %s65, %s79
      %p81 = scmp.eq.s32.totalorder %s22, 0
      %p82 = por %p80, %p81
      %s84 = sadd.s32 %s83, 1
      %p87 = scmp.eq.s32.totalorder %s16, 1
      %p88 = scmp.ne.s32.totalorder %s83, %s85
      %p89 = scmp.eq.s32.totalorder %s16, 0
      %p90 = por %p88, %p89
      %p91 = scmp.ne.s32.totalorder %s83, %s85
      %p92 = scmp.eq.s32.totalorder %s21, 1
      %p93 = por %p91, %p92
      %p94 = scmp.ne.s32.totalorder %s85, %s86
      %p95 = scmp.eq.s32.totalorder %s21, 0
      %p96 = por %p94, %p95
      %p97 = scmp.ne.s32.totalorder %s85, %s86
      %p98 = scmp.eq.s32.totalorder %s22, 1
      %p99 = por %p97, %p98
      %p101 = scmp.ne.s32.totalorder %s86, %s100
      %p102 = scmp.eq.s32.totalorder %s22, 0
      %p103 = por %p101, %p102
      %s105 = sadd.s32 %s104, 1
      %p108 = scmp.eq.s32.totalorder %s16, 1
      %p109 = scmp.ne.s32.totalorder %s104, %s106
      %p110 = scmp.eq.s32.totalorder %s16, 0
      %p111 = por %p109, %p110
      %p112 = scmp.ne.s32.totalorder %s104, %s106
      %p113 = scmp.eq.s32.totalorder %s21, 1
      %p114 = por %p112, %p113
      %p115 = scmp.ne.s32.totalorder %s106, %s107
      %p116 = scmp.eq.s32.totalorder %s21, 0
      %p117 = por %p115, %p116
      %p118 = scmp.ne.s32.totalorder %s106, %s107
      %p119 = scmp.eq.s32.totalorder %s22, 1
      %p120 = por %p118, %p119
      %p122 = scmp.ne.s32.totalorder %s107, %s121
      %p123 = scmp.eq.s32.totalorder %s22, 0
      %p124 = por %p122, %p123
      %s126 = sadd.s32 %s125, 1
      %p129 = scmp.eq.s32.totalorder %s16, 1
      %p130 = scmp.ne.s32.totalorder %s125, %s127
      %p131 = scmp.eq.s32.totalorder %s16, 0
      %p132 = por %p130, %p131
      %p133 = scmp.ne.s32.totalorder %s125, %s127
      %p134 = scmp.eq.s32.totalorder %s21, 1
      %p135 = por %p133, %p134
      %p136 = scmp.ne.s32.totalorder %s127, %s128
      %p137 = scmp.eq.s32.totalorder %s21, 0
      %p138 = por %p136, %p137
      %p139 = scmp.ne.s32.totalorder %s127, %s128
      %p140 = scmp.eq.s32.totalorder %s22, 1
      %p141 = por %p139, %p140
      %p143 = scmp.ne.s32.totalorder %s128, %s142
      %p144 = scmp.eq.s32.totalorder %s22, 0
      %p145 = por %p143, %p144
      %s147 = sadd.s32 %s146, 1
      %p150 = scmp.eq.s32.totalorder %s16, 1
      %p151 = scmp.ne.s32.totalorder %s146, %s148
      %p152 = scmp.eq.s32.totalorder %s16, 0
      %p153 = por %p151, %p152
      %p154 = scmp.ne.s32.totalorder %s146, %s148
      %p155 = scmp.eq.s32.totalorder %s21, 1
      %p156 = por %p154, %p155
      %p157 = scmp.ne.s32.totalorder %s148, %s149
      %p158 = scmp.eq.s32.totalorder %s21, 0
      %p159 = por %p157, %p158
      %p160 = scmp.ne.s32.totalorder %s148, %s149
      %p161 = scmp.eq.s32.totalorder %s22, 1
      %p162 = por %p160, %p161
      %p164 = scmp.ne.s32.totalorder %s149, %s163
      %p165 = scmp.eq.s32.totalorder %s22, 0
      %p166 = por %p164, %p165
      %s168 = sadd.s32 %s167, 1
      %p171 = scmp.eq.s32.totalorder %s16, 1
      %p172 = scmp.ne.s32.totalorder %s167, %s169
      %p173 = scmp.eq.s32.totalorder %s16, 0
      %p174 = por %p172, %p173
      %p175 = scmp.ne.s32.totalorder %s167, %s169
      %p176 = scmp.eq.s32.totalorder %s21, 1
      %p177 = por %p175, %p176
      %p178 = scmp.ne.s32.totalorder %s169, %s170
      %p179 = scmp.eq.s32.totalorder %s21, 0
      %p180 = por %p178, %p179
      %p181 = scmp.ne.s32.totalorder %s169, %s170
      %p182 = scmp.eq.s32.totalorder %s22, 1
      %p183 = por %p181, %p182
      %p185 = scmp.ne.s32.totalorder %s170, %s184
      %p186 = scmp.eq.s32.totalorder %s22, 0
      %p187 = por %p185, %p186
      %s188 = ssub.s32 %s23, %s35
      %s189 = ssub.s32 %s24, %s31
      %s190 = sor.u32 %s188, %s189
      %p191 = scmp.eq.s32.totalorder %s190, 0
      %s193 = sadd.s32 %s192, 1
      %s194 = scalar_select %p191, %s192, %s193
      %p197 = pneg %p191
      %p198 = scmp.eq.s32.totalorder %s16, 1
      %p199 = por %p197, %p198
      %p200 = scmp.ne.s32.totalorder %s192, %s195
      %p201 = scmp.eq.s32.totalorder %s16, 0
      %p202 = por %p200, %p201
      %p203 = scmp.ne.s32.totalorder %s192, %s195
      %p204 = scmp.eq.s32.totalorder %s21, 1
      %p205 = por %p203, %p204
      %p206 = scmp.ne.s32.totalorder %s195, %s196
      %p207 = scmp.eq.s32.totalorder %s21, 0
      %p208 = por %p206, %p207
      %p209 = scmp.ne.s32.totalorder %s195, %s196
      %p210 = scmp.eq.s32.totalorder %s22, 1
      %p211 = por %p209, %p210
      %p213 = scmp.ne.s32.totalorder %s196, %s212
      %p214 = scmp.eq.s32.totalorder %s22, 0
      %p215 = por %p213, %p214
      %p216 = scmp.le.s32.totalorder 1, %s16
      %p217 = scmp.lt.s32.totalorder %s16, 3
      %p218 = pnand %p216, %p217
      %p219 = pneg %p218
      // Predicated region
      $region9: #{tpu_custom_call.1} parent=5 // pred_check
        _
      $region10: #{tpu_custom_call.1} parent=5 // pred_check_branch
        %221 = sbr.rel (%p218) target = $region12
      $region11: #{tpu_custom_call.1} parent=5 // pred_region
        %s222 = ssub.s32 %s16, 1
        // Predicated region
        $region13: #{tpu_custom_call.1} parent=11 // pred_check
          %p223 = pneg %p75
        $region14: #{tpu_custom_call.1} parent=11 // pred_check_branch
          %225 = sbr.rel (%p223) target = $region16
        $region15: #{tpu_custom_call.1} parent=11 // pred_region
          _
        $region16: #{tpu_custom_call.1} parent=11 // pred_fallthru
          _
        // Predicated region
        $region17: #{tpu_custom_call.1} parent=11 // pred_check
          %p226 = pneg %p96
        $region18: #{tpu_custom_call.1} parent=11 // pred_check_branch
          %228 = sbr.rel (%p226) target = $region20
        $region19: #{tpu_custom_call.1} parent=11 // pred_region
          _
        $region20: #{tpu_custom_call.1} parent=11 // pred_fallthru
          _
        // Predicated region
        $region21: #{tpu_custom_call.1} parent=11 // pred_check
          %p229 = pneg %p117
        $region22: #{tpu_custom_call.1} parent=11 // pred_check_branch
          %231 = sbr.rel (%p229) target = $region24
        $region23: #{tpu_custom_call.1} parent=11 // pred_region
          _
        $region24: #{tpu_custom_call.1} parent=11 // pred_fallthru
          _
        // Predicated region
        $region25: #{tpu_custom_call.1} parent=11 // pred_check
          %p232 = pneg %p138
        $region26: #{tpu_custom_call.1} parent=11 // pred_check_branch
          %234 = sbr.rel (%p232) target = $region28
        $region27: #{tpu_custom_call.1} parent=11 // pred_region
          _
        $region28: #{tpu_custom_call.1} parent=11 // pred_fallthru
          _
        // Predicated region
        $region29: #{tpu_custom_call.1} parent=11 // pred_check
          %p235 = pneg %p159
        $region30: #{tpu_custom_call.1} parent=11 // pred_check_branch
          %237 = sbr.rel (%p235) target = $region32
        $region31: #{tpu_custom_call.1} parent=11 // pred_region
          _
        $region32: #{tpu_custom_call.1} parent=11 // pred_fallthru
          _
        // Predicated region
        $region33: #{tpu_custom_call.1} parent=11 // pred_check
          %p238 = pneg %p180
        $region34: #{tpu_custom_call.1} parent=11 // pred_check_branch
          %240 = sbr.rel (%p238) target = $region36
        $region35: #{tpu_custom_call.1} parent=11 // pred_region
          _
        $region36: #{tpu_custom_call.1} parent=11 // pred_fallthru
          _
      $region12: #{tpu_custom_call.1} parent=5 // pred_fallthru
        _
      %p241 = scmp.lt.s32.totalorder %s16, 2
      // Predicated region
      $region37: #{tpu_custom_call.1} parent=5 // pred_check
        %p242 = pneg %p241
      $region38: #{tpu_custom_call.1} parent=5 // pred_check_branch
        %244 = sbr.rel (%p242) target = $region40
      $region39: #{tpu_custom_call.1} parent=5 // pred_region
        // Predicated region
        $region41: #{tpu_custom_call.1} parent=39 // pred_check
          %p245 = pneg %p48
        $region42: #{tpu_custom_call.1} parent=39 // pred_check_branch
          %247 = sbr.rel (%p245) target = $region44
        $region43: #{tpu_custom_call.1} parent=39 // pred_region
          %p248 = scmp.lt.s32.totalorder %s23, 1
          %s249 = scalar_select %p248, %s23, 1
          %s250 = smul.addr %s249, 2
          %s251 = smul.addr %s250, 4
          %s252 = scalar_lea.vmem %s0, %s251
        $region44: #{tpu_custom_call.1} parent=39 // pred_fallthru
          _
      $region40: #{tpu_custom_call.1} parent=5 // pred_fallthru
        _
      %p253 = scmp.le.s32.totalorder 1, %s16
      %p254 = scmp.lt.s32.totalorder %s16, 3
      %p255 = pnand %p253, %p254
      %p256 = pneg %p255
      // Predicated region
      $region45: #{tpu_custom_call.1} parent=5 // pred_check
        _
      $region46: #{tpu_custom_call.1} parent=5 // pred_check_branch
        %258 = sbr.rel (%p255) target = $region48
      $region47: #{tpu_custom_call.1} parent=5 // pred_region
        %s259 = ssub.s32 %s16, 1
        %p260 = scmp.lt.s32.totalorder %s25, 1
        %s261 = scalar_select %p260, %s25, 1
        %s262 = smul.addr %s261, 2
        %s263 = smul.addr %s262, 4
        %s264 = scalar_lea.vmem %s0, %s263
        %p265 = pneg %p54
        %p266 = pneg %p51
        %p267 = pneg %p75
        %p268 = pneg %p72
        %p269 = pneg %p96
        %p270 = pneg %p93
        %p271 = pneg %p117
        %p272 = pneg %p114
        %p273 = pneg %p138
        %p274 = pneg %p135
        %p275 = pneg %p159
        %p276 = pneg %p156
        %p277 = pneg %p180
        %p278 = pneg %p177
        %p279 = pneg %p208
        %p280 = pneg %p205
        %s281 = sand.u32 %s195, 1
        %s282 = scalar_lea.sflag [#allocation5], %s281
        %s283 = sand.u32 %s195, 1
        %s284 = smul.addr %s283, 8
        %s285 = scalar_lea.vmem [#allocation4], %s284
        %p286 = scmp.lt.s32.totalorder %s25, 1
        %s287 = scalar_select %p286, %s25, 1
        %s288 = smul.addr %s287, 2
        %s289 = smul.addr %s288, 4
        %s290 = scalar_lea.vmem %s0, %s289
        %s291 = smul.u32 2, %s26
        %s293 = smul.u32 %s26, 256
        %p294 = scmp.eq.s32.totalorder %s26, 0
        // Predicated region
        $region49: #{tpu_custom_call.1} parent=47 // pred_check
          %p295 = pneg %p294
        $region50: #{tpu_custom_call.1} parent=47 // pred_check_branch
          %297 = sbr.rel (%p295) target = $region52
        $region51: #{tpu_custom_call.1} parent=47 // pred_region
          %v298 = vld [vmem:[%s290] sm:$0xff]
          %300 = vst [vmem:[#allocation1] ss:$2 sm:$0xff] %v298
          %v301 = vld.sshfl [vmem:[#allocation1] sm:$0xff pattern:$0x75316420]
          %v302 = vld.sshfl [vmem:[#allocation1 + $0x8] sm:$0xff pattern:$0x75316420]
          %v305 = vpack.c.bf16 %v301, %v301
          %v306 = vpack.c.bf16 %v302, %v302
          %v307 = vld [vmem:[%s3] sm:$0xf]
          %v308 = vld [vmem:[%s3 + $0x4] sm:$0xf]
          %v309 = vld [vmem:[%s3 + $0x8] sm:$0xf]
          %v310 = vld [vmem:[%s3 + $0xc] sm:$0xf]
          %v311 = vld [vmem:[%s3 + $0x10] sm:$0xf]
          %v312 = vld [vmem:[%s3 + $0x14] sm:$0xf]
          %v313 = vld [vmem:[%s3 + $0x18] sm:$0xf]
          %v314 = vld [vmem:[%s3 + $0x1c] sm:$0xf]
          %v315 = vld [vmem:[%s4] sm:$0xff]
          %v316 = vld [vmem:[%s4 + $0x8] sm:$0xff]
          %v317 = vld [vmem:[%s4 + $0x10] sm:$0xff]
          %v318 = vld [vmem:[%s4 + $0x18] sm:$0xff]
          %v319 = vld [vmem:[%s4 + $0x20] sm:$0xff]
          %v320 = vld [vmem:[%s4 + $0x28] sm:$0xff]
          %v321 = vld [vmem:[%s4 + $0x30] sm:$0xff]
          %v322 = vld [vmem:[%s4 + $0x38] sm:$0xff]
          %324 = vset.pattern.permute.xlu0 0
          %325 = vperm.xlu0 %324, %v315
          %v326 = vpop.permute.xlu0 %325
          %329 = vset.pattern.permute.xlu0 0
          %330 = vperm.xlu0 %329, %v316
          %v331 = vpop.permute.xlu0 %330
          %334 = vset.pattern.permute.xlu0 0
          %335 = vperm.xlu0 %334, %v317
          %v336 = vpop.permute.xlu0 %335
          %339 = vset.pattern.permute.xlu0 0
          %340 = vperm.xlu0 %339, %v318
          %v341 = vpop.permute.xlu0 %340
          %344 = vset.pattern.permute.xlu0 0
          %345 = vperm.xlu0 %344, %v319
          %v346 = vpop.permute.xlu0 %345
          %349 = vset.pattern.permute.xlu0 0
          %350 = vperm.xlu0 %349, %v320
          %v351 = vpop.permute.xlu0 %350
          %354 = vset.pattern.permute.xlu0 0
          %355 = vperm.xlu0 %354, %v321
          %v356 = vpop.permute.xlu0 %355
          %359 = vset.pattern.permute.xlu0 0
          %360 = vperm.xlu0 %359, %v322
          %v361 = vpop.permute.xlu0 %360
          %v371 = vunpack.c.l.b16 %v307
          %v372 = vunpack.c.l.b16 %v308
          %v373 = vunpack.c.l.b16 %v309
          %v374 = vunpack.c.l.b16 %v310
          %v375 = vunpack.c.l.b16 %v311
          %v376 = vunpack.c.l.b16 %v312
          %v377 = vunpack.c.l.b16 %v313
          %v378 = vunpack.c.l.b16 %v314
          %v379 = vpack.c.b16 %v372, %v371
          %v380 = vpack.c.b16 %v374, %v373
          %v381 = vpack.c.b16 %v376, %v375
          %v382 = vpack.c.b16 %v378, %v377
          %vm383 = vcmask 31744
          %v385 = vsel %vm383, %v379, 0
          %v388 = vsel %vm383, %v380, 0
          %v391 = vsel %vm383, %v381, 0
          %v394 = vsel %vm383, %v382, 0
          %vm396 = vcmask 1041408
          %v398 = vsel %vm396, %v305, 0
          %v401 = vsel %vm396, %v306, 0
          %403 = vmatpush.bf16.msra.mxu0 0
          %404 = vmatpush.bf16.msra.mxu0 0
          %405 = vmatpush.bf16.msra.mxu0 0
          %406 = vmatpush.bf16.msra.mxu0 0
          %407 = vmatpush.bf16.msra.mxu0 0
          %408 = vmatpush.bf16.msra.mxu0 0
          %409 = vmatpush.bf16.msra.mxu0 0
          %410 = vmatpush.bf16.msra.mxu0 %v398
          %411 = vmatmul.bf16.gmra.mxu0 %v385
          %v412 = vpop.f32.mrf.mxu0
          %v413 = vadd.f32 %v326, %v412
          %v414 = vpop.f32.mrf.mxu0
          %v415 = vadd.f32 %v331, %v414
          %416 = vmatmul.bf16.gmra.mxu0 %v388
          %v417 = vpop.f32.mrf.mxu0
          %v418 = vadd.f32 %v336, %v417
          %v419 = vpop.f32.mrf.mxu0
          %v420 = vadd.f32 %v341, %v419
          %421 = vmatmul.bf16.gmra.mxu0 %v391
          %v422 = vpop.f32.mrf.mxu0
          %v423 = vadd.f32 %v346, %v422
          %v424 = vpop.f32.mrf.mxu0
          %v425 = vadd.f32 %v351, %v424
          %426 = vmatmul.bf16.gmra.mxu0 %v394
          %v427 = vpop.f32.mrf.mxu0
          %v428 = vadd.f32 %v356, %v427
          %v429 = vpop.f32.mrf.mxu0
          %v430 = vadd.f32 %v361, %v429
          %431 = vdwg.mxu0
          %432 = vmatpush.bf16.msra.mxu0 0
          %433 = vmatpush.bf16.msra.mxu0 0
          %434 = vmatpush.bf16.msra.mxu0 0
          %435 = vmatpush.bf16.msra.mxu0 0
          %436 = vmatpush.bf16.msra.mxu0 0
          %437 = vmatpush.bf16.msra.mxu0 0
          %438 = vmatpush.bf16.msra.mxu0 0
          %439 = vmatpush.bf16.msra.mxu0 %v401
          %440 = vmatmul.bf16.gmra.mxu0 %v385
          %v441 = vpop.f32.mrf.mxu0
          %v442 = vadd.f32 %v326, %v441
          %v443 = vpop.f32.mrf.mxu0
          %v444 = vadd.f32 %v331, %v443
          %445 = vmatmul.bf16.gmra.mxu0 %v388
          %v446 = vpop.f32.mrf.mxu0
          %v447 = vadd.f32 %v336, %v446
          %v448 = vpop.f32.mrf.mxu0
          %v449 = vadd.f32 %v341, %v448
          %450 = vmatmul.bf16.gmra.mxu0 %v391
          %v451 = vpop.f32.mrf.mxu0
          %v452 = vadd.f32 %v346, %v451
          %v453 = vpop.f32.mrf.mxu0
          %v454 = vadd.f32 %v351, %v453
          %455 = vmatmul.bf16.gmra.mxu0 %v394
          %v456 = vpop.f32.mrf.mxu0
          %v457 = vadd.f32 %v356, %v456
          %v458 = vpop.f32.mrf.mxu0
          %v459 = vadd.f32 %v361, %v458
          %460 = vdwg.mxu0
          %v461 = vpack.c.bf16 %v442, %v413
          %v462 = vpack.c.bf16 %v444, %v415
          %v463 = vpack.c.bf16 %v447, %v418
          %v464 = vpack.c.bf16 %v449, %v420
          %465 = vst [vmem:[#allocation2] sm:$0xff] %v461
          %466 = vst [vmem:[#allocation2 + $0x8] sm:$0xff] %v462
          %467 = vst [vmem:[#allocation2 + $0x10] sm:$0xff] %v463
          %468 = vst [vmem:[#allocation2 + $0x18] sm:$0xff] %v464
          %v469 = vpack.c.bf16 %v452, %v423
          %v470 = vpack.c.bf16 %v454, %v425
          %v471 = vpack.c.bf16 %v457, %v428
          %v472 = vpack.c.bf16 %v459, %v430
          %473 = vst [vmem:[#allocation3] sm:$0xff] %v469
          %474 = vst [vmem:[#allocation3 + $0x8] sm:$0xff] %v470
          %475 = vst [vmem:[#allocation3 + $0x10] sm:$0xff] %v471
          %476 = vst [vmem:[#allocation3 + $0x18] sm:$0xff] %v472
        $region52: #{tpu_custom_call.1} parent=47 // pred_fallthru
          _
        %s477 = sshra.s32 %s293, 7
        %s478 = sand.u32 %s293, 127
        %s479 = smul.addr %s477, 4
        %s480 = scalar_lea.vmem %s290, %s479
        %v481 = vld [vmem:[%s480] sm:$0xff]
        %v482 = vld [vmem:[%s1] sm:$0xf]
        %v483 = vld [vmem:[%s1 + $0x4] sm:$0xf]
        %v484 = vld [vmem:[%s1 + $0x8] sm:$0xf]
        %v485 = vld [vmem:[%s1 + $0xc] sm:$0xf]
        %487 = vst [vmem:[#allocation1] ss:$2 sm:$0xff] %v481
        %v488 = vld.sshfl [vmem:[#allocation1] sm:$0xff pattern:$0x75316420]
        %v489 = vld.sshfl [vmem:[#allocation1 + $0x8] sm:$0xff pattern:$0x75316420]
        %v492 = vpack.c.bf16 %v488, %v488
        %v493 = vpack.c.bf16 %v489, %v489
        %v494 = vld [vmem:[%s2] sm:$0xff]
        %v495 = vld [vmem:[%s2 + $0x8] sm:$0xff]
        %v496 = vld [vmem:[%s2 + $0x10] sm:$0xff]
        %v497 = vld [vmem:[%s2 + $0x18] sm:$0xff]
        %499 = vset.pattern.permute.xlu0 0
        %500 = vperm.xlu0 %499, %v494
        %v501 = vpop.permute.xlu0 %500
        %504 = vset.pattern.permute.xlu0 0
        %505 = vperm.xlu0 %504, %v495
        %v506 = vpop.permute.xlu0 %505
        %509 = vset.pattern.permute.xlu0 0
        %510 = vperm.xlu0 %509, %v496
        %v511 = vpop.permute.xlu0 %510
        %514 = vset.pattern.permute.xlu0 0
        %515 = vperm.xlu0 %514, %v497
        %v516 = vpop.permute.xlu0 %515
        %v522 = vunpack.c.l.b16 %v482
        %v523 = vunpack.c.l.b16 %v483
        %v524 = vunpack.c.l.b16 %v484
        %v525 = vunpack.c.l.b16 %v485
        %v526 = vpack.c.b16 %v523, %v522
        %v527 = vpack.c.b16 %v525, %v524
        %vm528 = vcmask 31744
        %v530 = vsel %vm528, %v526, 0
        %v533 = vsel %vm528, %v527, 0
        %vm535 = vcmask 1041408
        %v537 = vsel %vm535, %v492, 0
        %v540 = vsel %vm535, %v493, 0
        %542 = vmatpush.bf16.msra.mxu0 0
        %543 = vmatpush.bf16.msra.mxu0 0
        %544 = vmatpush.bf16.msra.mxu0 0
        %545 = vmatpush.bf16.msra.mxu0 0
        %546 = vmatpush.bf16.msra.mxu0 0
        %547 = vmatpush.bf16.msra.mxu0 0
        %548 = vmatpush.bf16.msra.mxu0 0
        %549 = vmatpush.bf16.msra.mxu0 %v537
        %550 = vmatmul.bf16.gmra.mxu0 %v530
        %v551 = vpop.f32.mrf.mxu0
        %v552 = vadd.f32 %v501, %v551
        %v553 = vpop.f32.mrf.mxu0
        %v554 = vadd.f32 %v506, %v553
        %555 = vmatmul.bf16.gmra.mxu0 %v533
        %v556 = vpop.f32.mrf.mxu0
        %v557 = vadd.f32 %v511, %v556
        %v558 = vpop.f32.mrf.mxu0
        %v559 = vadd.f32 %v516, %v558
        %560 = vdwg.mxu0
        %561 = vmatpush.bf16.msra.mxu0 0
        %562 = vmatpush.bf16.msra.mxu0 0
        %563 = vmatpush.bf16.msra.mxu0 0
        %564 = vmatpush.bf16.msra.mxu0 0
        %565 = vmatpush.bf16.msra.mxu0 0
        %566 = vmatpush.bf16.msra.mxu0 0
        %567 = vmatpush.bf16.msra.mxu0 0
        %568 = vmatpush.bf16.msra.mxu0 %v540
        %569 = vmatmul.bf16.gmra.mxu0 %v530
        %v570 = vpop.f32.mrf.mxu0
        %v571 = vadd.f32 %v501, %v570
        %v572 = vpop.f32.mrf.mxu0
        %v573 = vadd.f32 %v506, %v572
        %574 = vmatmul.bf16.gmra.mxu0 %v533
        %v575 = vpop.f32.mrf.mxu0
        %v576 = vadd.f32 %v511, %v575
        %v577 = vpop.f32.mrf.mxu0
        %v578 = vadd.f32 %v516, %v577
        %579 = vdwg.mxu0
        %v580 = vpack.c.bf16 %v554, %v552
        %v581 = vpack.c.bf16 %v573, %v571
        %v582 = vpack.c.bf16 %v559, %v557
        %v583 = vpack.c.bf16 %v578, %v576
        %v584 = vld [vmem:[#allocation2] sm:$0xff]
        %v585 = vld [vmem:[#allocation2 + $0x8] sm:$0xff]
        %v586 = vld [vmem:[#allocation2 + $0x10] sm:$0xff]
        %v587 = vld [vmem:[#allocation2 + $0x18] sm:$0xff]
        %v592 = vunpack.c.l.b16 %v584
        %v593 = vunpack.c.h.b16 %v584
        %v594 = vunpack.c.l.b16 %v585
        %v595 = vunpack.c.h.b16 %v585
        %v596 = vunpack.c.l.b16 %v586
        %v597 = vunpack.c.h.b16 %v586
        %v598 = vunpack.c.l.b16 %v587
        %v599 = vunpack.c.h.b16 %v587
        %v600 = vpack.c.b16 %v594, %v592
        %v601 = vpack.c.b16 %v595, %v593
        %v602 = vpack.c.b16 %v598, %v596
        %v603 = vpack.c.b16 %v599, %v597
        %608 = vxpose.binary.xlu0.c.b16.start [1/16] %v601, %v600, 128
        %609 = vxpose.binary.xlu0.c.b16.cont [2/16] %v603, %v602, 128
        %610 = vxpose.binary.xlu0.c.b16.cont [3/16] 0, 0, 128
        %611 = vxpose.binary.xlu0.c.b16.cont [4/16] 0, 0, 128
        %612 = vxpose.binary.xlu0.c.b16.cont [5/16] 0, 0, 128
        %613 = vxpose.binary.xlu0.c.b16.cont [6/16] 0, 0, 128
        %614 = vxpose.binary.xlu0.c.b16.cont [7/16] 0, 0, 128
        %615 = vxpose.binary.xlu0.c.b16.end [8/16] 0, 0, 128
        %v616 = vpop.trf.xlu0
        %v617 = vpop.trf.xlu0
        %v618 = vpop.trf.xlu0
        %v619 = vpop.trf.xlu0
        %v620 = vpop.trf.xlu0
        %v621 = vpop.trf.xlu0
        %v622 = vpop.trf.xlu0
        %v623 = vpop.trf.xlu0
        %v624 = vpop.trf.xlu0
        %v625 = vpop.trf.xlu0
        %v626 = vpop.trf.xlu0
        %v627 = vpop.trf.xlu0
        %v628 = vpop.trf.xlu0
        %v629 = vpop.trf.xlu0
        %v630 = vpop.trf.xlu0
        %v631 = vpop.trf.xlu0
        %vm632 = vcmask 261120
        %v634 = vsel %vm632, %v616, 0
        %v637 = vsel %vm632, %v618, 0
        %v640 = vsel %vm632, %v620, 0
        %v643 = vsel %vm632, %v622, 0
        %v646 = vsel %vm632, %v624, 0
        %v649 = vsel %vm632, %v626, 0
        %v652 = vsel %vm632, %v628, 0
        %v655 = vsel %vm632, %v630, 0
        %v658 = vsel %vm632, %v617, 0
        %v661 = vsel %vm632, %v619, 0
        %v664 = vsel %vm632, %v621, 0
        %v667 = vsel %vm632, %v623, 0
        %v670 = vsel %vm632, %v625, 0
        %v673 = vsel %vm632, %v627, 0
        %v676 = vsel %vm632, %v629, 0
        %v679 = vsel %vm632, %v631, 0
        %681 = vmatpush.bf16.msra.mxu0 0
        %682 = vmatpush.bf16.msra.mxu0 0
        %683 = vmatpush.bf16.msra.mxu0 0
        %684 = vmatpush.bf16.msra.mxu0 0
        %685 = vmatpush.bf16.msra.mxu0 0
        %686 = vmatpush.bf16.msra.mxu0 0
        %687 = vmatpush.bf16.msra.mxu0 %v582
        %688 = vmatpush.bf16.msra.mxu0 %v580
        %689 = vmatmul.bf16.gmra.mxu0 %v634
        %v690 = vpop.f32.mrf.mxu0
        %v691 = vadd.f32 0.0, %v690
        %v692 = vpop.f32.mrf.mxu0
        %v693 = vadd.f32 0.0, %v692
        %694 = vmatmul.bf16.gmra.mxu0 %v637
        %v695 = vpop.f32.mrf.mxu0
        %v696 = vadd.f32 0.0, %v695
        %v697 = vpop.f32.mrf.mxu0
        %v698 = vadd.f32 0.0, %v697
        %699 = vmatmul.bf16.gmra.mxu0 %v640
        %v700 = vpop.f32.mrf.mxu0
        %v701 = vadd.f32 0.0, %v700
        %v702 = vpop.f32.mrf.mxu0
        %v703 = vadd.f32 0.0, %v702
        %704 = vmatmul.bf16.gmra.mxu0 %v643
        %v705 = vpop.f32.mrf.mxu0
        %v706 = vadd.f32 0.0, %v705
        %v707 = vpop.f32.mrf.mxu0
        %v708 = vadd.f32 0.0, %v707
        %709 = vmatmul.bf16.gmra.mxu0 %v646
        %v710 = vpop.f32.mrf.mxu0
        %v711 = vadd.f32 0.0, %v710
        %v712 = vpop.f32.mrf.mxu0
        %v713 = vadd.f32 0.0, %v712
        %714 = vmatmul.bf16.gmra.mxu0 %v649
        %v715 = vpop.f32.mrf.mxu0
        %v716 = vadd.f32 0.0, %v715
        %v717 = vpop.f32.mrf.mxu0
        %v718 = vadd.f32 0.0, %v717
        %719 = vmatmul.bf16.gmra.mxu0 %v652
        %v720 = vpop.f32.mrf.mxu0
        %v721 = vadd.f32 0.0, %v720
        %v722 = vpop.f32.mrf.mxu0
        %v723 = vadd.f32 0.0, %v722
        %724 = vmatmul.bf16.gmra.mxu0 %v655
        %v725 = vpop.f32.mrf.mxu0
        %v726 = vadd.f32 0.0, %v725
        %v727 = vpop.f32.mrf.mxu0
        %v728 = vadd.f32 0.0, %v727
        %729 = vmatmul.bf16.gmra.mxu0 %v658
        %v730 = vpop.f32.mrf.mxu0
        %v731 = vadd.f32 0.0, %v730
        %v732 = vpop.f32.mrf.mxu0
        %v733 = vadd.f32 0.0, %v732
        %734 = vmatmul.bf16.gmra.mxu0 %v661
        %v735 = vpop.f32.mrf.mxu0
        %v736 = vadd.f32 0.0, %v735
        %v737 = vpop.f32.mrf.mxu0
        %v738 = vadd.f32 0.0, %v737
        %739 = vmatmul.bf16.gmra.mxu0 %v664
        %v740 = vpop.f32.mrf.mxu0
        %v741 = vadd.f32 0.0, %v740
        %v742 = vpop.f32.mrf.mxu0
        %v743 = vadd.f32 0.0, %v742
        %744 = vmatmul.bf16.gmra.mxu0 %v667
        %v745 = vpop.f32.mrf.mxu0
        %v746 = vadd.f32 0.0, %v745
        %v747 = vpop.f32.mrf.mxu0
        %v748 = vadd.f32 0.0, %v747
        %749 = vmatmul.bf16.gmra.mxu0 %v670
        %v750 = vpop.f32.mrf.mxu0
        %v751 = vadd.f32 0.0, %v750
        %v752 = vpop.f32.mrf.mxu0
        %v753 = vadd.f32 0.0, %v752
        %754 = vmatmul.bf16.gmra.mxu0 %v673
        %v755 = vpop.f32.mrf.mxu0
        %v756 = vadd.f32 0.0, %v755
        %v757 = vpop.f32.mrf.mxu0
        %v758 = vadd.f32 0.0, %v757
        %759 = vmatmul.bf16.gmra.mxu0 %v676
        %v760 = vpop.f32.mrf.mxu0
        %v761 = vadd.f32 0.0, %v760
        %v762 = vpop.f32.mrf.mxu0
        %v763 = vadd.f32 0.0, %v762
        %764 = vmatmul.bf16.gmra.mxu0 %v679
        %v765 = vpop.f32.mrf.mxu0
        %v766 = vadd.f32 0.0, %v765
        %v767 = vpop.f32.mrf.mxu0
        %v768 = vadd.f32 0.0, %v767
        %769 = vdwg.mxu0
        %770 = vmatpush.bf16.msra.mxu0 0
        %771 = vmatpush.bf16.msra.mxu0 0
        %772 = vmatpush.bf16.msra.mxu0 0
        %773 = vmatpush.bf16.msra.mxu0 0
        %774 = vmatpush.bf16.msra.mxu0 0
        %775 = vmatpush.bf16.msra.mxu0 0
        %776 = vmatpush.bf16.msra.mxu0 %v583
        %777 = vmatpush.bf16.msra.mxu0 %v581
        %778 = vmatmul.bf16.gmra.mxu0 %v634
        %v779 = vpop.f32.mrf.mxu0
        %v780 = vadd.f32 0.0, %v779
        %v781 = vpop.f32.mrf.mxu0
        %v782 = vadd.f32 0.0, %v781
        %783 = vmatmul.bf16.gmra.mxu0 %v637
        %v784 = vpop.f32.mrf.mxu0
        %v785 = vadd.f32 0.0, %v784
        %v786 = vpop.f32.mrf.mxu0
        %v787 = vadd.f32 0.0, %v786
        %788 = vmatmul.bf16.gmra.mxu0 %v640
        %v789 = vpop.f32.mrf.mxu0
        %v790 = vadd.f32 0.0, %v789
        %v791 = vpop.f32.mrf.mxu0
        %v792 = vadd.f32 0.0, %v791
        %793 = vmatmul.bf16.gmra.mxu0 %v643
        %v794 = vpop.f32.mrf.mxu0
        %v795 = vadd.f32 0.0, %v794
        %v796 = vpop.f32.mrf.mxu0
        %v797 = vadd.f32 0.0, %v796
        %798 = vmatmul.bf16.gmra.mxu0 %v646
        %v799 = vpop.f32.mrf.mxu0
        %v800 = vadd.f32 0.0, %v799
        %v801 = vpop.f32.mrf.mxu0
        %v802 = vadd.f32 0.0, %v801
        %803 = vmatmul.bf16.gmra.mxu0 %v649
        %v804 = vpop.f32.mrf.mxu0
        %v805 = vadd.f32 0.0, %v804
        %v806 = vpop.f32.mrf.mxu0
        %v807 = vadd.f32 0.0, %v806
        %808 = vmatmul.bf16.gmra.mxu0 %v652
        %v809 = vpop.f32.mrf.mxu0
        %v810 = vadd.f32 0.0, %v809
        %v811 = vpop.f32.mrf.mxu0
        %v812 = vadd.f32 0.0, %v811
        %813 = vmatmul.bf16.gmra.mxu0 %v655
        %v814 = vpop.f32.mrf.mxu0
        %v815 = vadd.f32 0.0, %v814
        %v816 = vpop.f32.mrf.mxu0
        %v817 = vadd.f32 0.0, %v816
        %818 = vmatmul.bf16.gmra.mxu0 %v658
        %v819 = vpop.f32.mrf.mxu0
        %v820 = vadd.f32 0.0, %v819
        %v821 = vpop.f32.mrf.mxu0
        %v822 = vadd.f32 0.0, %v821
        %823 = vmatmul.bf16.gmra.mxu0 %v661
        %v824 = vpop.f32.mrf.mxu0
        %v825 = vadd.f32 0.0, %v824
        %v826 = vpop.f32.mrf.mxu0
        %v827 = vadd.f32 0.0, %v826
        %828 = vmatmul.bf16.gmra.mxu0 %v664
        %v829 = vpop.f32.mrf.mxu0
        %v830 = vadd.f32 0.0, %v829
        %v831 = vpop.f32.mrf.mxu0
        %v832 = vadd.f32 0.0, %v831
        %833 = vmatmul.bf16.gmra.mxu0 %v667
        %v834 = vpop.f32.mrf.mxu0
        %v835 = vadd.f32 0.0, %v834
        %v836 = vpop.f32.mrf.mxu0
        %v837 = vadd.f32 0.0, %v836
        %838 = vmatmul.bf16.gmra.mxu0 %v670
        %v839 = vpop.f32.mrf.mxu0
        %v840 = vadd.f32 0.0, %v839
        %v841 = vpop.f32.mrf.mxu0
        %v842 = vadd.f32 0.0, %v841
        %843 = vmatmul.bf16.gmra.mxu0 %v673
        %v844 = vpop.f32.mrf.mxu0
        %v845 = vadd.f32 0.0, %v844
        %v846 = vpop.f32.mrf.mxu0
        %v847 = vadd.f32 0.0, %v846
        %848 = vmatmul.bf16.gmra.mxu0 %v676
        %v849 = vpop.f32.mrf.mxu0
        %v850 = vadd.f32 0.0, %v849
        %v851 = vpop.f32.mrf.mxu0
        %v852 = vadd.f32 0.0, %v851
        %853 = vmatmul.bf16.gmra.mxu0 %v679
        %v854 = vpop.f32.mrf.mxu0
        %v855 = vadd.f32 0.0, %v854
        %v856 = vpop.f32.mrf.mxu0
        %v857 = vadd.f32 0.0, %v856
        %858 = vdwg.mxu0
        %v859 = vmax.f32 %v691, %v696
        %v860 = vmax.f32 %v693, %v698
        %v861 = vmax.f32 %v859, %v701
        %v862 = vmax.f32 %v860, %v703
        %v863 = vmax.f32 %v861, %v706
        %v864 = vmax.f32 %v862, %v708
        %v865 = vmax.f32 %v863, %v711
        %v866 = vmax.f32 %v864, %v713
        %v867 = vmax.f32 %v865, %v716
        %v868 = vmax.f32 %v866, %v718
        %v869 = vmax.f32 %v867, %v721
        %v870 = vmax.f32 %v868, %v723
        %v871 = vmax.f32 %v869, %v726
        %v872 = vmax.f32 %v870, %v728
        %v873 = vmax.f32 %v871, %v731
        %v874 = vmax.f32 %v872, %v733
        %v875 = vmax.f32 %v873, %v736
        %v876 = vmax.f32 %v874, %v738
        %v877 = vmax.f32 %v875, %v741
        %v878 = vmax.f32 %v876, %v743
        %v879 = vmax.f32 %v877, %v746
        %v880 = vmax.f32 %v878, %v748
        %v881 = vmax.f32 %v879, %v751
        %v882 = vmax.f32 %v880, %v753
        %v883 = vmax.f32 %v881, %v756
        %v884 = vmax.f32 %v882, %v758
        %v885 = vmax.f32 %v883, %v761
        %v886 = vmax.f32 %v884, %v763
        %v887 = vmax.f32 %v885, %v766
        %v888 = vmax.f32 %v886, %v768
        %v889 = vmax.f32 %v887, %v888
        %v890 = vrot.slane %v889, 4
        %v891 = vmax.f32 %v889, %v890
        %v892 = vrot.slane %v891, 2
        %v893 = vmax.f32 %v891, %v892
        %v894 = vrot.slane %v893, 1
        %v895 = vmax.f32 %v893, %v894
        %v896 = vmax.f32 %v780, %v785
        %v897 = vmax.f32 %v782, %v787
        %v898 = vmax.f32 %v896, %v790
        %v899 = vmax.f32 %v897, %v792
        %v900 = vmax.f32 %v898, %v795
        %v901 = vmax.f32 %v899, %v797
        %v902 = vmax.f32 %v900, %v800
        %v903 = vmax.f32 %v901, %v802
        %v904 = vmax.f32 %v902, %v805
        %v905 = vmax.f32 %v903, %v807
        %v906 = vmax.f32 %v904, %v810
        %v907 = vmax.f32 %v905, %v812
        %v908 = vmax.f32 %v906, %v815
        %v909 = vmax.f32 %v907, %v817
        %v910 = vmax.f32 %v908, %v820
        %v911 = vmax.f32 %v909, %v822
        %v912 = vmax.f32 %v910, %v825
        %v913 = vmax.f32 %v911, %v827
        %v914 = vmax.f32 %v912, %v830
        %v915 = vmax.f32 %v913, %v832
        %v916 = vmax.f32 %v914, %v835
        %v917 = vmax.f32 %v915, %v837
        %v918 = vmax.f32 %v916, %v840
        %v919 = vmax.f32 %v917, %v842
        %v920 = vmax.f32 %v918, %v845
        %v921 = vmax.f32 %v919, %v847
        %v922 = vmax.f32 %v920, %v850
        %v923 = vmax.f32 %v921, %v852
        %v924 = vmax.f32 %v922, %v855
        %v925 = vmax.f32 %v923, %v857
        %v926 = vmax.f32 %v924, %v925
        %v927 = vrot.slane %v926, 4
        %v928 = vmax.f32 %v926, %v927
        %v929 = vrot.slane %v928, 2
        %v930 = vmax.f32 %v928, %v929
        %v931 = vrot.slane %v930, 1
        %v932 = vmax.f32 %v930, %v931
        %v933 = vsub.f32 %v691, %v895
        %v934 = vsub.f32 %v780, %v932
        %v935 = vsub.f32 %v693, %v895
        %v936 = vsub.f32 %v782, %v932
        %v937 = vsub.f32 %v696, %v895
        %v938 = vsub.f32 %v785, %v932
        %v939 = vsub.f32 %v698, %v895
        %v940 = vsub.f32 %v787, %v932
        %v941 = vsub.f32 %v701, %v895
        %v942 = vsub.f32 %v790, %v932
        %v943 = vsub.f32 %v703, %v895
        %v944 = vsub.f32 %v792, %v932
        %v945 = vsub.f32 %v706, %v895
        %v946 = vsub.f32 %v795, %v932
        %v947 = vsub.f32 %v708, %v895
        %v948 = vsub.f32 %v797, %v932
        %v949 = vsub.f32 %v711, %v895
        %v950 = vsub.f32 %v800, %v932
        %v951 = vsub.f32 %v713, %v895
        %v952 = vsub.f32 %v802, %v932
        %v953 = vsub.f32 %v716, %v895
        %v954 = vsub.f32 %v805, %v932
        %v955 = vsub.f32 %v718, %v895
        %v956 = vsub.f32 %v807, %v932
        %v957 = vsub.f32 %v721, %v895
        %v958 = vsub.f32 %v810, %v932
        %v959 = vsub.f32 %v723, %v895
        %v960 = vsub.f32 %v812, %v932
        %v961 = vsub.f32 %v726, %v895
        %v962 = vsub.f32 %v815, %v932
        %v963 = vsub.f32 %v728, %v895
        %v964 = vsub.f32 %v817, %v932
        %v965 = vsub.f32 %v731, %v895
        %v966 = vsub.f32 %v820, %v932
        %v967 = vsub.f32 %v733, %v895
        %v968 = vsub.f32 %v822, %v932
        %v969 = vsub.f32 %v736, %v895
        %v970 = vsub.f32 %v825, %v932
        %v971 = vsub.f32 %v738, %v895
        %v972 = vsub.f32 %v827, %v932
        %v973 = vsub.f32 %v741, %v895
        %v974 = vsub.f32 %v830, %v932
        %v975 = vsub.f32 %v743, %v895
        %v976 = vsub.f32 %v832, %v932
        %v977 = vsub.f32 %v746, %v895
        %v978 = vsub.f32 %v835, %v932
        %v979 = vsub.f32 %v748, %v895
        %v980 = vsub.f32 %v837, %v932
        %v981 = vsub.f32 %v751, %v895
        %v982 = vsub.f32 %v840, %v932
        %v983 = vsub.f32 %v753, %v895
        %v984 = vsub.f32 %v842, %v932
        %v985 = vsub.f32 %v756, %v895
        %v986 = vsub.f32 %v845, %v932
        %v987 = vsub.f32 %v758, %v895
        %v988 = vsub.f32 %v847, %v932
        %v989 = vsub.f32 %v761, %v895
        %v990 = vsub.f32 %v850, %v932
        %v991 = vsub.f32 %v763, %v895
        %v992 = vsub.f32 %v852, %v932
        %v993 = vsub.f32 %v766, %v895
        %v994 = vsub.f32 %v855, %v932
        %v995 = vsub.f32 %v768, %v895
        %v996 = vsub.f32 %v857, %v932
        %v997 = vmul.f32 %v933, 1.442695
        %v998 = vpow.pop %v997
        %v999 = vmul.f32 %v934, 1.442695
        %v1000 = vpow.pop %v999
        %v1001 = vmul.f32 %v935, 1.442695
        %v1002 = vpow.pop %v1001
        %v1003 = vmul.f32 %v936, 1.442695
        %v1004 = vpow.pop %v1003
        %v1005 = vmul.f32 %v937, 1.442695
        %v1006 = vpow.pop %v1005
        %v1007 = vmul.f32 %v938, 1.442695
        %v1008 = vpow.pop %v1007
        %v1009 = vmul.f32 %v939, 1.442695
        %v1010 = vpow.pop %v1009
        %v1011 = vmul.f32 %v940, 1.442695
        %v1012 = vpow.pop %v1011
        %v1013 = vmul.f32 %v941, 1.442695
        %v1014 = vpow.pop %v1013
        %v1015 = vmul.f32 %v942, 1.442695
        %v1016 = vpow.pop %v1015
        %v1017 = vmul.f32 %v943, 1.442695
        %v1018 = vpow.pop %v1017
        %v1019 = vmul.f32 %v944, 1.442695
        %v1020 = vpow.pop %v1019
        %v1021 = vmul.f32 %v945, 1.442695
        %v1022 = vpow.pop %v1021
        %v1023 = vmul.f32 %v946, 1.442695
        %v1024 = vpow.pop %v1023
        %v1025 = vmul.f32 %v947, 1.442695
        %v1026 = vpow.pop %v1025
        %v1027 = vmul.f32 %v948, 1.442695
        %v1028 = vpow.pop %v1027
        %v1029 = vmul.f32 %v949, 1.442695
        %v1030 = vpow.pop %v1029
        %v1031 = vmul.f32 %v950, 1.442695
        %v1032 = vpow.pop %v1031
        %v1033 = vmul.f32 %v951, 1.442695
        %v1034 = vpow.pop %v1033
        %v1035 = vmul.f32 %v952, 1.442695
        %v1036 = vpow.pop %v1035
        %v1037 = vmul.f32 %v953, 1.442695
        %v1038 = vpow.pop %v1037
        %v1039 = vmul.f32 %v954, 1.442695
        %v1040 = vpow.pop %v1039
        %v1041 = vmul.f32 %v955, 1.442695
        %v1042 = vpow.pop %v1041
        %v1043 = vmul.f32 %v956, 1.442695
        %v1044 = vpow.pop %v1043
        %v1045 = vmul.f32 %v957, 1.442695
        %v1046 = vpow.pop %v1045
        %v1047 = vmul.f32 %v958, 1.442695
        %v1048 = vpow.pop %v1047
        %v1049 = vmul.f32 %v959, 1.442695
        %v1050 = vpow.pop %v1049
        %v1051 = vmul.f32 %v960, 1.442695
        %v1052 = vpow.pop %v1051
        %v1053 = vmul.f32 %v961, 1.442695
        %v1054 = vpow.pop %v1053
        %v1055 = vmul.f32 %v962, 1.442695
        %v1056 = vpow.pop %v1055
        %v1057 = vmul.f32 %v963, 1.442695
        %v1058 = vpow.pop %v1057
        %v1059 = vmul.f32 %v964, 1.442695
        %v1060 = vpow.pop %v1059
        %v1061 = vmul.f32 %v965, 1.442695
        %v1062 = vpow.pop %v1061
        %v1063 = vmul.f32 %v966, 1.442695
        %v1064 = vpow.pop %v1063
        %v1065 = vmul.f32 %v967, 1.442695
        %v1066 = vpow.pop %v1065
        %v1067 = vmul.f32 %v968, 1.442695
        %v1068 = vpow.pop %v1067
        %v1069 = vmul.f32 %v969, 1.442695
        %v1070 = vpow.pop %v1069
        %v1071 = vmul.f32 %v970, 1.442695
        %v1072 = vpow.pop %v1071
        %v1073 = vmul.f32 %v971, 1.442695
        %v1074 = vpow.pop %v1073
        %v1075 = vmul.f32 %v972, 1.442695
        %v1076 = vpow.pop %v1075
        %v1077 = vmul.f32 %v973, 1.442695
        %v1078 = vpow.pop %v1077
        %v1079 = vmul.f32 %v974, 1.442695
        %v1080 = vpow.pop %v1079
        %v1081 = vmul.f32 %v975, 1.442695
        %v1082 = vpow.pop %v1081
        %v1083 = vmul.f32 %v976, 1.442695
        %v1084 = vpow.pop %v1083
        %v1085 = vmul.f32 %v977, 1.442695
        %v1086 = vpow.pop %v1085
        %v1087 = vmul.f32 %v978, 1.442695
        %v1088 = vpow.pop %v1087
        %v1089 = vmul.f32 %v979, 1.442695
        %v1090 = vpow.pop %v1089
        %v1091 = vmul.f32 %v980, 1.442695
        %v1092 = vpow.pop %v1091
        %v1093 = vmul.f32 %v981, 1.442695
        %v1094 = vpow.pop %v1093
        %v1095 = vmul.f32 %v982, 1.442695
        %v1096 = vpow.pop %v1095
        %v1097 = vmul.f32 %v983, 1.442695
        %v1098 = vpow.pop %v1097
        %v1099 = vmul.f32 %v984, 1.442695
        %v1100 = vpow.pop %v1099
        %v1101 = vmul.f32 %v985, 1.442695
        %v1102 = vpow.pop %v1101
        %v1103 = vmul.f32 %v986, 1.442695
        %v1104 = vpow.pop %v1103
        %v1105 = vmul.f32 %v987, 1.442695
        %v1106 = vpow.pop %v1105
        %v1107 = vmul.f32 %v988, 1.442695
        %v1108 = vpow.pop %v1107
        %v1109 = vmul.f32 %v989, 1.442695
        %v1110 = vpow.pop %v1109
        %v1111 = vmul.f32 %v990, 1.442695
        %v1112 = vpow.pop %v1111
        %v1113 = vmul.f32 %v991, 1.442695
        %v1114 = vpow.pop %v1113
        %v1115 = vmul.f32 %v992, 1.442695
        %v1116 = vpow.pop %v1115
        %v1117 = vmul.f32 %v993, 1.442695
        %v1118 = vpow.pop %v1117
        %v1119 = vmul.f32 %v994, 1.442695
        %v1120 = vpow.pop %v1119
        %v1121 = vmul.f32 %v995, 1.442695
        %v1122 = vpow.pop %v1121
        %v1123 = vmul.f32 %v996, 1.442695
        %v1124 = vpow.pop %v1123
        %v1125 = vadd.f32 %v998, %v1002
        %v1126 = vadd.f32 %v1125, %v1006
        %v1127 = vadd.f32 %v1126, %v1010
        %v1128 = vadd.f32 %v1127, %v1014
        %v1129 = vadd.f32 %v1128, %v1018
        %v1130 = vadd.f32 %v1129, %v1022
        %v1131 = vadd.f32 %v1130, %v1026
        %v1132 = vadd.f32 %v1131, %v1030
        %v1133 = vadd.f32 %v1132, %v1034
        %v1134 = vadd.f32 %v1133, %v1038
        %v1135 = vadd.f32 %v1134, %v1042
        %v1136 = vadd.f32 %v1135, %v1046
        %v1137 = vadd.f32 %v1136, %v1050
        %v1138 = vadd.f32 %v1137, %v1054
        %v1139 = vadd.f32 %v1138, %v1058
        %v1140 = vadd.f32 %v1139, %v1062
        %v1141 = vadd.f32 %v1140, %v1066
        %v1142 = vadd.f32 %v1141, %v1070
        %v1143 = vadd.f32 %v1142, %v1074
        %v1144 = vadd.f32 %v1143, %v1078
        %v1145 = vadd.f32 %v1144, %v1082
        %v1146 = vadd.f32 %v1145, %v1086
        %v1147 = vadd.f32 %v1146, %v1090
        %v1148 = vadd.f32 %v1147, %v1094
        %v1149 = vadd.f32 %v1148, %v1098
        %v1150 = vadd.f32 %v1149, %v1102
        %v1151 = vadd.f32 %v1150, %v1106
        %v1152 = vadd.f32 %v1151, %v1110
        %v1153 = vadd.f32 %v1152, %v1114
        %v1154 = vadd.f32 %v1153, %v1118
        %v1155 = vadd.f32 %v1154, %v1122
        %v1156 = vrot.slane %v1155, 4
        %v1157 = vadd.f32 %v1155, %v1156
        %v1158 = vrot.slane %v1157, 2
        %v1159 = vadd.f32 %v1157, %v1158
        %v1160 = vrot.slane %v1159, 1
        %v1161 = vadd.f32 %v1159, %v1160
        %v1162 = vadd.f32 %v1000, %v1004
        %v1163 = vadd.f32 %v1162, %v1008
        %v1164 = vadd.f32 %v1163, %v1012
        %v1165 = vadd.f32 %v1164, %v1016
        %v1166 = vadd.f32 %v1165, %v1020
        %v1167 = vadd.f32 %v1166, %v1024
        %v1168 = vadd.f32 %v1167, %v1028
        %v1169 = vadd.f32 %v1168, %v1032
        %v1170 = vadd.f32 %v1169, %v1036
        %v1171 = vadd.f32 %v1170, %v1040
        %v1172 = vadd.f32 %v1171, %v1044
        %v1173 = vadd.f32 %v1172, %v1048
        %v1174 = vadd.f32 %v1173, %v1052
        %v1175 = vadd.f32 %v1174, %v1056
        %v1176 = vadd.f32 %v1175, %v1060
        %v1177 = vadd.f32 %v1176, %v1064
        %v1178 = vadd.f32 %v1177, %v1068
        %v1179 = vadd.f32 %v1178, %v1072
        %v1180 = vadd.f32 %v1179, %v1076
        %v1181 = vadd.f32 %v1180, %v1080
        %v1182 = vadd.f32 %v1181, %v1084
        %v1183 = vadd.f32 %v1182, %v1088
        %v1184 = vadd.f32 %v1183, %v1092
        %v1185 = vadd.f32 %v1184, %v1096
        %v1186 = vadd.f32 %v1185, %v1100
        %v1187 = vadd.f32 %v1186, %v1104
        %v1188 = vadd.f32 %v1187, %v1108
        %v1189 = vadd.f32 %v1188, %v1112
        %v1190 = vadd.f32 %v1189, %v1116
        %v1191 = vadd.f32 %v1190, %v1120
        %v1192 = vadd.f32 %v1191, %v1124
        %v1193 = vrot.slane %v1192, 4
        %v1194 = vadd.f32 %v1192, %v1193
        %v1195 = vrot.slane %v1194, 2
        %v1196 = vadd.f32 %v1194, %v1195
        %v1197 = vrot.slane %v1196, 1
        %v1198 = vadd.f32 %v1196, %v1197
        %v1199 = vrcp.pop %v1161
        %v1200 = vrcp.pop %v1198
        %v1201 = vld [vmem:[#allocation3] sm:$0xff]
        %v1202 = vld [vmem:[#allocation3 + $0x8] sm:$0xff]
        %v1203 = vld [vmem:[#allocation3 + $0x10] sm:$0xff]
        %v1204 = vld [vmem:[#allocation3 + $0x18] sm:$0xff]
        %v1205 = vpack.c.bf16 %v1002, %v998
        %v1206 = vpack.c.bf16 %v1004, %v1000
        %v1207 = vpack.c.bf16 %v1010, %v1006
        %v1208 = vpack.c.bf16 %v1012, %v1008
        %v1209 = vpack.c.bf16 %v1018, %v1014
        %v1210 = vpack.c.bf16 %v1020, %v1016
        %v1211 = vpack.c.bf16 %v1026, %v1022
        %v1212 = vpack.c.bf16 %v1028, %v1024
        %v1213 = vpack.c.bf16 %v1034, %v1030
        %v1214 = vpack.c.bf16 %v1036, %v1032
        %v1215 = vpack.c.bf16 %v1042, %v1038
        %v1216 = vpack.c.bf16 %v1044, %v1040
        %v1217 = vpack.c.bf16 %v1050, %v1046
        %v1218 = vpack.c.bf16 %v1052, %v1048
        %v1219 = vpack.c.bf16 %v1058, %v1054
        %v1220 = vpack.c.bf16 %v1060, %v1056
        %v1221 = vpack.c.bf16 %v1066, %v1062
        %v1222 = vpack.c.bf16 %v1068, %v1064
        %v1223 = vpack.c.bf16 %v1074, %v1070
        %v1224 = vpack.c.bf16 %v1076, %v1072
        %v1225 = vpack.c.bf16 %v1082, %v1078
        %v1226 = vpack.c.bf16 %v1084, %v1080
        %v1227 = vpack.c.bf16 %v1090, %v1086
        %v1228 = vpack.c.bf16 %v1092, %v1088
        %v1229 = vpack.c.bf16 %v1098, %v1094
        %v1230 = vpack.c.bf16 %v1100, %v1096
        %v1231 = vpack.c.bf16 %v1106, %v1102
        %v1232 = vpack.c.bf16 %v1108, %v1104
        %v1233 = vpack.c.bf16 %v1114, %v1110
        %v1234 = vpack.c.bf16 %v1116, %v1112
        %v1235 = vpack.c.bf16 %v1122, %v1118
        %v1236 = vpack.c.bf16 %v1124, %v1120
        %v1241 = vunpack.c.l.b16 %v1201
        %v1242 = vunpack.c.h.b16 %v1201
        %v1243 = vunpack.c.l.b16 %v1202
        %v1244 = vunpack.c.h.b16 %v1202
        %v1245 = vunpack.c.l.b16 %v1203
        %v1246 = vunpack.c.h.b16 %v1203
        %v1247 = vunpack.c.l.b16 %v1204
        %v1248 = vunpack.c.h.b16 %v1204
        %v1249 = vpack.c.b16 %v1243, %v1241
        %v1250 = vpack.c.b16 %v1244, %v1242
        %v1251 = vpack.c.b16 %v1247, %v1245
        %v1252 = vpack.c.b16 %v1248, %v1246
        %1257 = vmatpush.bf16.msra.mxu0 %v1219
        %1258 = vmatpush.bf16.msra.mxu0 %v1217
        %1259 = vmatpush.bf16.msra.mxu0 %v1215
        %1260 = vmatpush.bf16.msra.mxu0 %v1213
        %1261 = vmatpush.bf16.msra.mxu0 %v1211
        %1262 = vmatpush.bf16.msra.mxu0 %v1209
        %1263 = vmatpush.bf16.msra.mxu0 %v1207
        %1264 = vmatpush.bf16.msra.mxu0 %v1205
        %1265 = vmatmul.bf16.gmra.mxu0 %v1249
        %v1266 = vpop.f32.mrf.mxu0
        %v1267 = vadd.f32 0.0, %v1266
        %v1268 = vpop.f32.mrf.mxu0
        %v1269 = vadd.f32 0.0, %v1268
        %1270 = vmatmul.bf16.gmra.mxu0 %v1251
        %v1271 = vpop.f32.mrf.mxu0
        %v1272 = vadd.f32 0.0, %v1271
        %v1273 = vpop.f32.mrf.mxu0
        %v1274 = vadd.f32 0.0, %v1273
        %1275 = vdwg.mxu0
        %1276 = vmatpush.bf16.msra.mxu0 %v1235
        %1277 = vmatpush.bf16.msra.mxu0 %v1233
        %1278 = vmatpush.bf16.msra.mxu0 %v1231
        %1279 = vmatpush.bf16.msra.mxu0 %v1229
        %1280 = vmatpush.bf16.msra.mxu0 %v1227
        %1281 = vmatpush.bf16.msra.mxu0 %v1225
        %1282 = vmatpush.bf16.msra.mxu0 %v1223
        %1283 = vmatpush.bf16.msra.mxu0 %v1221
        %1284 = vmatmul.bf16.gmra.mxu0 %v1250
        %v1285 = vpop.f32.mrf.mxu0
        %v1286 = vadd.f32 %v1267, %v1285
        %v1287 = vpop.f32.mrf.mxu0
        %v1288 = vadd.f32 %v1269, %v1287
        %1289 = vmatmul.bf16.gmra.mxu0 %v1252
        %v1290 = vpop.f32.mrf.mxu0
        %v1291 = vadd.f32 %v1272, %v1290
        %v1292 = vpop.f32.mrf.mxu0
        %v1293 = vadd.f32 %v1274, %v1292
        %1294 = vdwg.mxu0
        %1295 = vmatpush.bf16.msra.mxu0 %v1220
        %1296 = vmatpush.bf16.msra.mxu0 %v1218
        %1297 = vmatpush.bf16.msra.mxu0 %v1216
        %1298 = vmatpush.bf16.msra.mxu0 %v1214
        %1299 = vmatpush.bf16.msra.mxu0 %v1212
        %1300 = vmatpush.bf16.msra.mxu0 %v1210
        %1301 = vmatpush.bf16.msra.mxu0 %v1208
        %1302 = vmatpush.bf16.msra.mxu0 %v1206
        %1303 = vmatmul.bf16.gmra.mxu0 %v1249
        %v1304 = vpop.f32.mrf.mxu0
        %v1305 = vadd.f32 0.0, %v1304
        %v1306 = vpop.f32.mrf.mxu0
        %v1307 = vadd.f32 0.0, %v1306
        %1308 = vmatmul.bf16.gmra.mxu0 %v1251
        %v1309 = vpop.f32.mrf.mxu0
        %v1310 = vadd.f32 0.0, %v1309
        %v1311 = vpop.f32.mrf.mxu0
        %v1312 = vadd.f32 0.0, %v1311
        %1313 = vdwg.mxu0
        %1314 = vmatpush.bf16.msra.mxu0 %v1236
        %1315 = vmatpush.bf16.msra.mxu0 %v1234
        %1316 = vmatpush.bf16.msra.mxu0 %v1232
        %1317 = vmatpush.bf16.msra.mxu0 %v1230
        %1318 = vmatpush.bf16.msra.mxu0 %v1228
        %1319 = vmatpush.bf16.msra.mxu0 %v1226
        %1320 = vmatpush.bf16.msra.mxu0 %v1224
        %1321 = vmatpush.bf16.msra.mxu0 %v1222
        %1322 = vmatmul.bf16.gmra.mxu0 %v1250
        %v1323 = vpop.f32.mrf.mxu0
        %v1324 = vadd.f32 %v1305, %v1323
        %v1325 = vpop.f32.mrf.mxu0
        %v1326 = vadd.f32 %v1307, %v1325
        %1327 = vmatmul.bf16.gmra.mxu0 %v1252
        %v1328 = vpop.f32.mrf.mxu0
        %v1329 = vadd.f32 %v1310, %v1328
        %v1330 = vpop.f32.mrf.mxu0
        %v1331 = vadd.f32 %v1312, %v1330
        %1332 = vdwg.mxu0
        %v1333 = vld [vmem:[%s5] sm:$0xf]
        %v1335 = vsel %vm632, %v1333, 0
        %1337 = vmatpush.msra.mxu0 0.0
        %1338 = vmatpush.msra.mxu0 0.0
        %1339 = vmatpush.msra.mxu0 0.0
        %1340 = vmatpush.msra.mxu0 0.0
        %1341 = vmatpush.msra.mxu0 0.0
        %1342 = vmatpush.msra.mxu0 0.0
        %1343 = vmatpush.msra.mxu0 0.0
        %1344 = vmatpush.msra.mxu0 0.0
        %1345 = vmatpush.msra.mxu0 0.0
        %1346 = vmatpush.msra.mxu0 0.0
        %1347 = vmatpush.msra.mxu0 0.0
        %1348 = vmatpush.msra.mxu0 0.0
        %1349 = vmatpush.msra.mxu0 %v1293
        %1350 = vmatpush.msra.mxu0 %v1291
        %1351 = vmatpush.msra.mxu0 %v1288
        %1352 = vmatpush.msra.mxu0 %v1286
        %1353 = vmatmul.f32.gmra.mxu0 %v1335
        %v1354 = vpop.f32.mrf.mxu0
        %v1355 = vadd.f32 0.0, %v1354
        %1356 = vdwg.mxu0
        %1357 = vmatpush.msra.mxu0 0.0
        %1358 = vmatpush.msra.mxu0 0.0
        %1359 = vmatpush.msra.mxu0 0.0
        %1360 = vmatpush.msra.mxu0 0.0
        %1361 = vmatpush.msra.mxu0 0.0
        %1362 = vmatpush.msra.mxu0 0.0
        %1363 = vmatpush.msra.mxu0 0.0
        %1364 = vmatpush.msra.mxu0 0.0
        %1365 = vmatpush.msra.mxu0 0.0
        %1366 = vmatpush.msra.mxu0 0.0
        %1367 = vmatpush.msra.mxu0 0.0
        %1368 = vmatpush.msra.mxu0 0.0
        %1369 = vmatpush.msra.mxu0 %v1331
        %1370 = vmatpush.msra.mxu0 %v1329
        %1371 = vmatpush.msra.mxu0 %v1326
        %1372 = vmatpush.msra.mxu0 %v1324
        %1373 = vmatmul.f32.gmra.mxu0 %v1335
        %v1374 = vpop.f32.mrf.mxu0
        %v1375 = vadd.f32 0.0, %v1374
        %1376 = vdwg.mxu0
        %v1377 = vmul.f32 %v1355, %v1199
        %v1378 = vmul.f32 %v1375, %v1200
        %v1379 = vld [vmem:[%s6] sm:$0xf]
        %1381 = vset.pattern.permute.xlu0 0
        %1382 = vperm.xlu0 %1381, %v1379
        %v1383 = vpop.permute.xlu0 %1382
        %v1385 = vadd.f32 %v1377, %v1383
        %v1386 = vadd.f32 %v1378, %v1383
        %1387 = vst [vmem:[#allocation1] ss:$2 sm:$0xff] %v481
        %v1388 = vld.sshfl [vmem:[#allocation1] sm:$0xff pattern:$0x75316420]
        %v1389 = vld.sshfl [vmem:[#allocation1 + $0x8] sm:$0xff pattern:$0x75316420]
        %v1392 = vadd.f32 %v1385, %v1388
        %v1393 = vadd.f32 %v1386, %v1389
        %v1396 = vrot.slane %v1393, 4
        %vm1397 = vcmask 1043456
        %v1398 = vsel %vm1397, %v1392, %v1396
        %1400 = vst [vmem:[%s285] sm:$0xff] %v1398
        %s1401 = sand.u32 %s195, 1
        %s1402 = scalar_lea.sflag [#allocation5], %s1401
        %s1403 = sand.u32 %s195, 1
        %s1404 = smul.addr %s1403, 8
        %s1405 = scalar_lea.vmem [#allocation4], %s1404
        // Predicated region
        $region53: #{tpu_custom_call.1} parent=47 // pred_check
          %p1406 = pneg %p205
        $region54: #{tpu_custom_call.1} parent=47 // pred_check_branch
          %1408 = sbr.rel (%p1406) target = $region56
        $region55: #{tpu_custom_call.1} parent=47 // pred_region
          %s1409 = smul.u32 2, %s26
          %1411 = vsyncadd %s1402, 0
          %s1412 = smul.addr %s25, 2
          %s1413 = sadd.s32 %s1409, %s1412
          %s1414 = smul.addr %s1413, 4
          %s1415 = scalar_lea.hbm %s7, %s1414
          %s1417 = sshll.u32 %s1405, 4
          %s1418 = int_to_ptr.vmem [resolvable:$true] %s1417
          %s1419 = sshll.u32 %s1415, 4
          %s1420 = int_to_ptr.hbm [resolvable:$true] %s1419
          %1422 = dma.vmem_to_hbm [thread:$0]  %s1418, 128, %s1420, %s1402
        $region56: #{tpu_custom_call.1} parent=47 // pred_fallthru
          _
      $region48: #{tpu_custom_call.1} parent=5 // pred_fallthru
        _
      %p1423 = scmp.le.s32.totalorder 2, %s16
      // Predicated region
      $region57: #{tpu_custom_call.1} parent=5 // pred_check
        %p1424 = pneg %p1423
      $region58: #{tpu_custom_call.1} parent=5 // pred_check_branch
        %1426 = sbr.rel (%p1424) target = $region60
      $region59: #{tpu_custom_call.1} parent=5 // pred_region
        %s1427 = ssub.s32 %s16, 2
        // Predicated region
        $region61: #{tpu_custom_call.1} parent=59 // pred_check
          %p1428 = pneg %p211
        $region62: #{tpu_custom_call.1} parent=59 // pred_check_branch
          %1430 = sbr.rel (%p1428) target = $region64
        $region63: #{tpu_custom_call.1} parent=59 // pred_region
          %s1431 = sand.u32 %s196, 1
          %s1432 = scalar_lea.sflag [#allocation5], %s1431
          %s1433 = sand.u32 %s196, 1
          %s1434 = smul.addr %s1433, 8
          %s1435 = scalar_lea.vmem [#allocation4], %s1434
          %1437 = dma.done %s1432, 128
        $region64: #{tpu_custom_call.1} parent=59 // pred_fallthru
          _
      $region60: #{tpu_custom_call.1} parent=5 // pred_fallthru
        _
    $region6: #{tpu_custom_call.1} parent=1 // loop_footer
      %s20 = sadd.s32 1, %s16
    $region7: #{tpu_custom_call.1} parent=1 // loop_footer_branch
      %15 = sbr.rel target = $region3
    $region8: #{tpu_custom_call.1} parent=1 // loop_exit
      _
    %1438 = vsyncpa [#allocation5], 1
    %s1439 = scalar_lea.sflag [#allocation5], 1
    %1440 = vsyncpa %s1439, 1

</llo_original>
